<compile_context>
chip_gen: v5e
topology: v5e:2x2
jax: 0.10.0
libtpu: 0.0.40
codegen_flags: <defaults>
</compile_context>

<pallas_src>
import jax
import jax.numpy as jnp
from jax import lax
from jax.experimental import pallas as pl
from jax.experimental.pallas import tpu as pltpu


def _round_up(x: int, m: int) -> int:
    return (x + m - 1) // m * m


def _cdiv(a: int, b: int) -> int:
    return (a + b - 1) // b


def _sigmoid(z):
    # One EUP transcendental per sigmoid; avoids exp + exact f32 divide.
    return 0.5 * jnp.tanh(0.5 * z) + 0.5


def mlp_xor_kernel(params_ref, sel_ref, x_ref, o_ref):
    """params_ref: SMEM f32[9] = [w1_00,w1_01,w1_10,w1_11,b1_0,b1_1,w2_00,w2_01,b2_0]
       sel_ref:    VMEM f32[256,256] constant lane-deinterleave matrix ([x0 | x1] selector)
       x_ref:      VMEM in_dtype[R,256]  batch-major, the 2 features interleaved on lanes
       o_ref:      VMEM in_dtype[R,128]  one output per batch element (lane/sublane dense)
    """
    x = x_ref[...].astype(jnp.float32)                      # (R, 256)

    # Deinterleave even/odd lanes on the MXU: column j picks lane 2j (feature 0),
    # column 128+j picks lane 2j+1 (feature 1).  HIGHEST precision keeps f32 exactness.
    xs = jnp.dot(x, sel_ref[...],
                 preferred_element_type=jnp.float32,
                 precision=lax.Precision.HIGHEST)           # (R, 256) = [x0 | x1]
    x0 = xs[:, 0:128]                                       # (R, 128) dense
    x1 = xs[:, 128:256]                                     # (R, 128) dense

    # Scalar parameter reads from SMEM, broadcast into VPU FMAs.
    w1_00 = params_ref[0]
    w1_01 = params_ref[1]
    w1_10 = params_ref[2]
    w1_11 = params_ref[3]
    b1_0 = params_ref[4]
    b1_1 = params_ref[5]
    w2_0 = params_ref[6]
    w2_1 = params_ref[7]
    b2_0 = params_ref[8]

    # Layer 1 (PyTorch Linear convention: x @ W.T + b), layer 2, all in f32.
    h0 = _sigmoid(w1_00 * x0 + w1_01 * x1 + b1_0)
    h1 = _sigmoid(w1_10 * x0 + w1_11 * x1 + b1_1)
    y = _sigmoid(w2_0 * h0 + w2_1 * h1 + b2_0)

    o_ref[...] = y.astype(o_ref.dtype)


def mlp_xor_forward(x, w1, b1, w2, b2, *, block_rows=None):
    """x: (B, 2); w1: (2, 2); b1: (2,); w2: (1, 2); b2: (1,) — PyTorch conventions.
    Returns (B, 1), matching MLPXOR.forward."""
    B, F = x.shape
    assert F == 2, "MLPXOR expects 2 input features"
    in_dtype = x.dtype
    itemsize = jnp.dtype(in_dtype).itemsize

    # Each "row" covers 128 batch elements (256 interleaved lanes).
    rows = _cdiv(B, 128)
    if block_rows is None:
        # Target ~2048 rows (~3 MiB f32 I/O) per grid step; >=2 blocks for large batches
        # so v7x's two TensorCores both get work on the "parallel" axis.
        n_blocks_target = max(1, _cdiv(rows, 2048))
        block_rows = _cdiv(rows, n_blocks_target)
    block_rows = _round_up(max(block_rows, 1), 8)
    rows_p = _round_up(rows, block_rows)
    n_blocks = rows_p // block_rows
    Bp = rows_p * 128

    # Native layout: only a (free) contiguous reshape; pad the batch tail if needed.
    xp = x if Bp == B else jnp.pad(x, ((0, Bp - B), (0, 0)))
    x_int = xp.reshape(rows_p, 256)

    # All 9 parameters packed into one SMEM-resident scalar vector (36 bytes).
    params = jnp.concatenate(
        [w1.reshape(-1), b1.reshape(-1), w2.reshape(-1), b2.reshape(-1)]
    ).astype(jnp.float32)                                   # f32[9]

    # Constant deinterleave matrix: sel[2j, j] = 1, sel[2j+1, 128+j] = 1.
    j = jnp.arange(128)
    sel = jnp.zeros((256, 256), jnp.float32)
    sel = sel.at[2 * j, j].set(1.0)
    sel = sel.at[2 * j + 1, j + 128].set(1.0)

    out = pl.pallas_call(
        mlp_xor_kernel,
        out_shape=jax.ShapeDtypeStruct((rows_p, 128), in_dtype),
        grid=(n_blocks,),
        in_specs=[
            pl.BlockSpec(memory_space=pltpu.MemorySpace.SMEM),        # params (whole array)
            pl.BlockSpec((256, 256), lambda i: (0, 0)),               # sel, resident
            pl.BlockSpec((block_rows, 256), lambda i: (i, 0)),        # x tile
        ],
        out_specs=pl.BlockSpec((block_rows, 128), lambda i: (i, 0)),
        compiler_params=pltpu.CompilerParams(
            dimension_semantics=("parallel",),
            vmem_limit_bytes=48 * 1024 * 1024,   # covers double-buffered blocks on all gens
        ),
        cost_estimate=pl.CostEstimate(
            flops=2 * rows_p * 256 * 256 + 9 * Bp,
            transcendentals=3 * Bp,
            bytes_accessed=rows_p * (256 + 128) * itemsize + 256 * 256 * 4 + 9 * 4,
        ),
    )(params, sel, x_int)

    return out.reshape(Bp)[:B].reshape(B, 1)


def reference_forward(x, w1, b1, w2, b2):
    h = jax.nn.sigmoid(jnp.dot(x, w1.T, precision=lax.Precision.HIGHEST) + b1)
    return jax.nn.sigmoid(jnp.dot(h, w2.T, precision=lax.Precision.HIGHEST) + b2)


if __name__ == "__main__":
    key = jax.random.PRNGKey(0)
    k_x, k_w1, k_b1, k_w2, k_b2, k_x2 = jax.random.split(key, 6)

    # Deterministic parameter init (weights ~ N(0,1) like .normal_() in the module).
    w1 = jax.random.normal(k_w1, (2, 2), dtype=jnp.float32)
    b1 = jax.random.normal(k_b1, (2,), dtype=jnp.float32) * 0.1
    w2 = jax.random.normal(k_w2, (1, 2), dtype=jnp.float32)
    b2 = jax.random.normal(k_b2, (1,), dtype=jnp.float32) * 0.1

    # XOR-style tiny batch.
    B = 4
    x = jax.random.normal(k_x, (B, 2), dtype=jnp.float32)
    out = jax.block_until_ready(mlp_xor_forward(x, w1, b1, w2, b2))
    ref = reference_forward(x, w1, b1, w2, b2)
    assert out.shape == (B, 1)
    assert bool(jnp.allclose(out, ref, atol=1e-4, rtol=1e-4))

    # Larger, ragged batch exercising multiple grid steps and the padded tail.
    B2 = 3000
    x2 = jax.random.normal(k_x2, (B2, 2), dtype=jnp.float32)
    out2 = jax.block_until_ready(mlp_xor_forward(x2, w1, b1, w2, b2, block_rows=8))
    ref2 = reference_forward(x2, w1, b1, w2, b2)
    assert out2.shape == (B2, 1)
    assert bool(jnp.allclose(out2, ref2, atol=1e-4, rtol=1e-4))

    print("KERNEL_OK")
</pallas_src>

<mosaic_0001>
module attributes {stable_mosaic.version = 11 : i64} {
  func.func @mlp_xor_kernel(%arg0: i32, %arg1: memref<9xf32, #tpu.memory_space<smem>>, %arg2: memref<256x256xf32, #tpu.memory_space<vmem>>, %arg3: memref<8x256xf32, #tpu.memory_space<vmem>>, %arg4: memref<8x128xf32, #tpu.memory_space<vmem>>) attributes {dimension_semantics = [#tpu.dimension_semantics<parallel>], iteration_bounds = array<i64: 1>, scalar_prefetch = 0 : i64, scratch_operands = 0 : i64, tpu.core_type = #tpu.core_type<tc>, window_params = [{transform_indices = @transform_0, window_bounds = array<i64: 9>}, {pipeline_mode = #tpu.pipeline_mode<synchronous>, transform_indices = @transform_1, window_bounds = array<i64: 256, 256>}, {transform_indices = @transform_2, window_bounds = array<i64: 8, 256>}, {transform_indices = @transform_3, window_bounds = array<i64: 8, 128>}]} {
    %c0 = arith.constant 0 : index
    %c0_0 = arith.constant 0 : index
    %0 = vector.load %arg3[%c0, %c0_0] : memref<8x256xf32, #tpu.memory_space<vmem>>, vector<8x256xf32>
    %c0_1 = arith.constant 0 : index
    %c0_2 = arith.constant 0 : index
    %1 = vector.load %arg2[%c0_1, %c0_2] : memref<256x256xf32, #tpu.memory_space<vmem>>, vector<256x256xf32>
    %cst = arith.constant dense<0.000000e+00> : vector<8x256xf32>
    %2 = tpu.matmul %0, %1, %cst {dimension_numbers = #tpu.dot_dimension_numbers<[1], [0], [0], [1], [0, 0, 1, 1], [], []>, precision = #tpu.contract_precision<fp32>} : vector<8x256xf32>, vector<256x256xf32>, vector<8x256xf32> -> vector<8x256xf32>
    %3 = vector.extract_strided_slice %2 {offsets = [0, 0], sizes = [8, 128], strides = [1, 1]} : vector<8x256xf32> to vector<8x128xf32>
    %4 = vector.extract_strided_slice %2 {offsets = [0, 128], sizes = [8, 128], strides = [1, 1]} : vector<8x256xf32> to vector<8x128xf32>
    %c0_3 = arith.constant 0 : index
    %5 = memref.load %arg1[%c0_3] : memref<9xf32, #tpu.memory_space<smem>>
    %c1 = arith.constant 1 : index
    %6 = memref.load %arg1[%c1] : memref<9xf32, #tpu.memory_space<smem>>
    %c2 = arith.constant 2 : index
    %7 = memref.load %arg1[%c2] : memref<9xf32, #tpu.memory_space<smem>>
    %c3 = arith.constant 3 : index
    %8 = memref.load %arg1[%c3] : memref<9xf32, #tpu.memory_space<smem>>
    %c4 = arith.constant 4 : index
    %9 = memref.load %arg1[%c4] : memref<9xf32, #tpu.memory_space<smem>>
    %c5 = arith.constant 5 : index
    %10 = memref.load %arg1[%c5] : memref<9xf32, #tpu.memory_space<smem>>
    %c6 = arith.constant 6 : index
    %11 = memref.load %arg1[%c6] : memref<9xf32, #tpu.memory_space<smem>>
    %c7 = arith.constant 7 : index
    %12 = memref.load %arg1[%c7] : memref<9xf32, #tpu.memory_space<smem>>
    %c8 = arith.constant 8 : index
    %13 = memref.load %arg1[%c8] : memref<9xf32, #tpu.memory_space<smem>>
    %14 = vector.broadcast %5 : f32 to vector<8x128xf32>
    %15 = arith.mulf %14, %3 : vector<8x128xf32>
    %16 = vector.broadcast %6 : f32 to vector<8x128xf32>
    %17 = arith.mulf %16, %4 : vector<8x128xf32>
    %18 = arith.addf %15, %17 : vector<8x128xf32>
    %19 = vector.broadcast %9 : f32 to vector<8x128xf32>
    %20 = arith.addf %18, %19 : vector<8x128xf32>
    %cst_4 = arith.constant 5.000000e-01 : f32
    %21 = vector.broadcast %cst_4 : f32 to vector<8x128xf32>
    %22 = arith.mulf %21, %20 : vector<8x128xf32>
    %23 = math.tanh %22 : vector<8x128xf32>
    %cst_5 = arith.constant 5.000000e-01 : f32
    %24 = vector.broadcast %cst_5 : f32 to vector<8x128xf32>
    %25 = arith.mulf %24, %23 : vector<8x128xf32>
    %cst_6 = arith.constant 5.000000e-01 : f32
    %26 = vector.broadcast %cst_6 : f32 to vector<8x128xf32>
    %27 = arith.addf %25, %26 : vector<8x128xf32>
    %28 = vector.broadcast %7 : f32 to vector<8x128xf32>
    %29 = arith.mulf %28, %3 : vector<8x128xf32>
    %30 = vector.broadcast %8 : f32 to vector<8x128xf32>
    %31 = arith.mulf %30, %4 : vector<8x128xf32>
    %32 = arith.addf %29, %31 : vector<8x128xf32>
    %33 = vector.broadcast %10 : f32 to vector<8x128xf32>
    %34 = arith.addf %32, %33 : vector<8x128xf32>
    %cst_7 = arith.constant 5.000000e-01 : f32
    %35 = vector.broadcast %cst_7 : f32 to vector<8x128xf32>
    %36 = arith.mulf %35, %34 : vector<8x128xf32>
    %37 = math.tanh %36 : vector<8x128xf32>
    %cst_8 = arith.constant 5.000000e-01 : f32
    %38 = vector.broadcast %cst_8 : f32 to vector<8x128xf32>
    %39 = arith.mulf %38, %37 : vector<8x128xf32>
    %cst_9 = arith.constant 5.000000e-01 : f32
    %40 = vector.broadcast %cst_9 : f32 to vector<8x128xf32>
    %41 = arith.addf %39, %40 : vector<8x128xf32>
    %42 = vector.broadcast %11 : f32 to vector<8x128xf32>
    %43 = arith.mulf %42, %27 : vector<8x128xf32>
    %44 = vector.broadcast %12 : f32 to vector<8x128xf32>
    %45 = arith.mulf %44, %41 : vector<8x128xf32>
    %46 = arith.addf %43, %45 : vector<8x128xf32>
    %47 = vector.broadcast %13 : f32 to vector<8x128xf32>
    %48 = arith.addf %46, %47 : vector<8x128xf32>
    %cst_10 = arith.constant 5.000000e-01 : f32
    %49 = vector.broadcast %cst_10 : f32 to vector<8x128xf32>
    %50 = arith.mulf %49, %48 : vector<8x128xf32>
    %51 = math.tanh %50 : vector<8x128xf32>
    %cst_11 = arith.constant 5.000000e-01 : f32
    %52 = vector.broadcast %cst_11 : f32 to vector<8x128xf32>
    %53 = arith.mulf %52, %51 : vector<8x128xf32>
    %cst_12 = arith.constant 5.000000e-01 : f32
    %54 = vector.broadcast %cst_12 : f32 to vector<8x128xf32>
    %55 = arith.addf %53, %54 : vector<8x128xf32>
    %c0_13 = arith.constant 0 : index
    %c0_14 = arith.constant 0 : index
    %56 = vector.load %arg4[%c0_13, %c0_14] : memref<8x128xf32, #tpu.memory_space<vmem>>, vector<8x128xf32>
    tpu.vector_store %arg4[%c0_13, %c0_14], %55 {strides = array<i32>} : memref<8x128xf32, #tpu.memory_space<vmem>>, vector<8x128xf32>,
    return
  }
  func.func @transform_0(%arg0: i32) -> i32 {
    %c0_i32 = arith.constant 0 : i32
    %c0_i32_0 = arith.constant 0 : i32
    return %c0_i32 : i32
  }
  func.func @transform_1(%arg0: i32) -> (i32, i32) {
    %c0_i32 = arith.constant 0 : i32
    %c0_i32_0 = arith.constant 0 : i32
    %c0_i32_1 = arith.constant 0 : i32
    return %c0_i32, %c0_i32_0 : i32, i32
  }
  func.func @transform_2(%arg0: i32) -> (i32, i32) {
    %c0_i32 = arith.constant 0 : i32
    %c0_i32_0 = arith.constant 0 : i32
    return %arg0, %c0_i32 : i32, i32
  }
  func.func @transform_3(%arg0: i32) -> (i32, i32) {
    %c0_i32 = arith.constant 0 : i32
    %c0_i32_0 = arith.constant 0 : i32
    return %arg0, %c0_i32 : i32, i32
  }
}

</mosaic_0001>

<llo_original>
// kernel: tpu_custom_call.1
$region0: #{tpu_custom_call.1}
  #allocation0 [shape = 'u32[]', space=smem, size = 0x4, offset = 0x4, fixed_abs, tag = 'smem constant byte address 0x4 - core index']
  #allocation1 [shape = 'u32[72,128]{1,0:T(1,128)}', space=vmem, size = 0x9000, scoped, tag = 'internal scratch']
  %s0 = inlined_call_operand.hbm [shape: f32[9], index: 0, kind: input, shape index: {}]
  %s1 = inlined_call_operand.hbm [shape: f32[256,256], index: 1, kind: input, shape index: {}]
  %s2 = inlined_call_operand.hbm [shape: f32[8,256], index: 2, kind: input, shape index: {}]
  %s3 = inlined_call_operand.hbm [shape: f32[8,128], index: 3, kind: output, shape index: {}]
  %s4 = sld [smem:[#allocation0]]
  $region34: #{tpu_custom_call.1} parent=0
    _
  %s6 = ssub.s32 1, %s4
  %s7 = scalar_select 0, %s6, %s4
  $region1: #{tpu_custom_call.1} parent=0
    #allocation2 [shape = 'u8[512]{0}', space=smem, size = 0x200, scoped, tag = 'input window, operand 0, single buffered']
    #allocation3 [shape = 's32[1]{0}', space=sflag, size = 0x4, scoped, tag = 'scoped memory for tpu_custom_call.1']
    #allocation4 [shape = 's32[1]{0}', space=sflag, size = 0x4, scoped, tag = 'scoped memory for tpu_custom_call.1']
    #allocation5 [shape = 's32[1]{0}', space=sflag, size = 0x4, scoped, tag = 'scoped memory for tpu_custom_call.1']
    #allocation6 [shape = 'u8[262144]{0}', space=vmem, size = 0x40000, scoped, tag = 'input window, operand 1, single buffered']
    #allocation7 [shape = 'u8[8192]{0}', space=vmem, size = 0x2000, scoped, tag = 'input window, operand 2, single buffered']
    #allocation8 [shape = 's32[1]{0}', space=sflag, size = 0x4, scoped, tag = 'scoped memory for tpu_custom_call.1']
    #allocation9 [shape = 'u8[4096]{0}', space=vmem, size = 0x1000, scoped, tag = 'output window, operand 0, single buffered']
    %8 = vsyncpa [#allocation5], 0
    %9 = vsyncpa [#allocation3], 0
    %10 = vsyncpa [#allocation8], 0
    %11 = vsyncpa [#allocation4], 0
    // Predicated region
    $region2: #{tpu_custom_call.1} parent=1 // pred_check
      _
    $region3: #{tpu_custom_call.1} parent=1 // pred_check_branch
      %13 = sbr.rel (0) target = $region5
    $region4: #{tpu_custom_call.1} parent=1 // pred_region
      %15 = vsyncadd [#allocation5], 0
      %s17 = sshll.u32 %s0, 4
      %s18 = int_to_ptr.hbm [resolvable:$true] %s17
      %20 = dma.hbm_to_smem %s18, 16, [#allocation2], [#allocation5]
    $region5: #{tpu_custom_call.1} parent=1 // pred_fallthru
      _
    // Predicated region
    $region6: #{tpu_custom_call.1} parent=1 // pred_check
      _
    $region7: #{tpu_custom_call.1} parent=1 // pred_check_branch
      %22 = sbr.rel (0) target = $region9
    $region8: #{tpu_custom_call.1} parent=1 // pred_region
      %24 = vsyncadd [#allocation3], 0
      %s25 = sshll.u32 %s1, 4
      %s26 = int_to_ptr.hbm [resolvable:$true] %s25
      %s27 = sshll.u32 [#allocation6], 4
      %s28 = int_to_ptr.vmem [resolvable:$true] %s27
      %33 = dma.hbm_to_vmem [thread:$0]  %s26, 8192, %s28, [#allocation3], 256, 256, 16
    $region9: #{tpu_custom_call.1} parent=1 // pred_fallthru
      _
    // Predicated region
    $region10: #{tpu_custom_call.1} parent=1 // pred_check
      _
    $region11: #{tpu_custom_call.1} parent=1 // pred_check_branch
      %35 = sbr.rel (0) target = $region13
    $region12: #{tpu_custom_call.1} parent=1 // pred_region
      %37 = vsyncadd [#allocation8], 0
      %s39 = sshll.u32 %s2, 4
      %s40 = int_to_ptr.hbm [resolvable:$true] %s39
      %s41 = sshll.u32 [#allocation7], 4
      %s42 = int_to_ptr.vmem [resolvable:$true] %s41
      %44 = dma.hbm_to_vmem [thread:$0]  %s40, 256, %s42, [#allocation8]
    $region13: #{tpu_custom_call.1} parent=1 // pred_fallthru
      _
    // Predicated region
    $region14: #{tpu_custom_call.1} parent=1 // pred_check
      _
    $region15: #{tpu_custom_call.1} parent=1 // pred_check_branch
      %46 = sbr.rel (0) target = $region17
    $region16: #{tpu_custom_call.1} parent=1 // pred_region
      %48 = dma.done [#allocation5], 16
    $region17: #{tpu_custom_call.1} parent=1 // pred_fallthru
      _
    // Predicated region
    $region18: #{tpu_custom_call.1} parent=1 // pred_check
      _
    $region19: #{tpu_custom_call.1} parent=1 // pred_check_branch
      %50 = sbr.rel (0) target = $region21
    $region20: #{tpu_custom_call.1} parent=1 // pred_region
      %52 = dma.done [#allocation3], 8192
    $region21: #{tpu_custom_call.1} parent=1 // pred_fallthru
      _
    // Predicated region
    $region22: #{tpu_custom_call.1} parent=1 // pred_check
      _
    $region23: #{tpu_custom_call.1} parent=1 // pred_check_branch
      %54 = sbr.rel (0) target = $region25
    $region24: #{tpu_custom_call.1} parent=1 // pred_region
      %56 = dma.done [#allocation8], 256
    $region25: #{tpu_custom_call.1} parent=1 // pred_fallthru
      _
    %57 = sfence
    %v58 = vld [vmem:[#allocation7] sm:$0xff]
    %v59 = vld [vmem:[#allocation7 + $0x8] sm:$0xff]
    %v60 = vld [vmem:[#allocation6] sm:$0xff]
    %v61 = vld [vmem:[#allocation6 + $0x8] sm:$0xff]
    %v62 = vld [vmem:[#allocation6 + $0x10] sm:$0xff]
    %v63 = vld [vmem:[#allocation6 + $0x18] sm:$0xff]
    %v64 = vld [vmem:[#allocation6 + $0x20] sm:$0xff]
    %v65 = vld [vmem:[#allocation6 + $0x28] sm:$0xff]
    %v66 = vld [vmem:[#allocation6 + $0x30] sm:$0xff]
    %v67 = vld [vmem:[#allocation6 + $0x38] sm:$0xff]
    %v68 = vld [vmem:[#allocation6 + $0x40] sm:$0xff]
    %v69 = vld [vmem:[#allocation6 + $0x48] sm:$0xff]
    %v70 = vld [vmem:[#allocation6 + $0x50] sm:$0xff]
    %v71 = vld [vmem:[#allocation6 + $0x58] sm:$0xff]
    %v72 = vld [vmem:[#allocation6 + $0x60] sm:$0xff]
    %v73 = vld [vmem:[#allocation6 + $0x68] sm:$0xff]
    %v74 = vld [vmem:[#allocation6 + $0x70] sm:$0xff]
    %v75 = vld [vmem:[#allocation6 + $0x78] sm:$0xff]
    %v76 = vld [vmem:[#allocation6 + $0x80] sm:$0xff]
    %v77 = vld [vmem:[#allocation6 + $0x88] sm:$0xff]
    %v78 = vld [vmem:[#allocation6 + $0x90] sm:$0xff]
    %v79 = vld [vmem:[#allocation6 + $0x98] sm:$0xff]
    %v80 = vld [vmem:[#allocation6 + $0xa0] sm:$0xff]
    %v81 = vld [vmem:[#allocation6 + $0xa8] sm:$0xff]
    %v82 = vld [vmem:[#allocation6 + $0xb0] sm:$0xff]
    %v83 = vld [vmem:[#allocation6 + $0xb8] sm:$0xff]
    %v84 = vld [vmem:[#allocation6 + $0xc0] sm:$0xff]
    %v85 = vld [vmem:[#allocation6 + $0xc8] sm:$0xff]
    %v86 = vld [vmem:[#allocation6 + $0xd0] sm:$0xff]
    %v87 = vld [vmem:[#allocation6 + $0xd8] sm:$0xff]
    %v88 = vld [vmem:[#allocation6 + $0xe0] sm:$0xff]
    %v89 = vld [vmem:[#allocation6 + $0xe8] sm:$0xff]
    %v90 = vld [vmem:[#allocation6 + $0xf0] sm:$0xff]
    %v91 = vld [vmem:[#allocation6 + $0xf8] sm:$0xff]
    %v92 = vld [vmem:[#allocation6 + $0x100] sm:$0xff]
    %v93 = vld [vmem:[#allocation6 + $0x108] sm:$0xff]
    %v94 = vld [vmem:[#allocation6 + $0x110] sm:$0xff]
    %v95 = vld [vmem:[#allocation6 + $0x118] sm:$0xff]
    %v96 = vld [vmem:[#allocation6 + $0x120] sm:$0xff]
    %v97 = vld [vmem:[#allocation6 + $0x128] sm:$0xff]
    %v98 = vld [vmem:[#allocation6 + $0x130] sm:$0xff]
    %v99 = vld [vmem:[#allocation6 + $0x138] sm:$0xff]
    %v100 = vld [vmem:[#allocation6 + $0x140] sm:$0xff]
    %v101 = vld [vmem:[#allocation6 + $0x148] sm:$0xff]
    %v102 = vld [vmem:[#allocation6 + $0x150] sm:$0xff]
    %v103 = vld [vmem:[#allocation6 + $0x158] sm:$0xff]
    %v104 = vld [vmem:[#allocation6 + $0x160] sm:$0xff]
    %v105 = vld [vmem:[#allocation6 + $0x168] sm:$0xff]
    %v106 = vld [vmem:[#allocation6 + $0x170] sm:$0xff]
    %v107 = vld [vmem:[#allocation6 + $0x178] sm:$0xff]
    %v108 = vld [vmem:[#allocation6 + $0x180] sm:$0xff]
    %v109 = vld [vmem:[#allocation6 + $0x188] sm:$0xff]
    %v110 = vld [vmem:[#allocation6 + $0x190] sm:$0xff]
    %v111 = vld [vmem:[#allocation6 + $0x198] sm:$0xff]
    %v112 = vld [vmem:[#allocation6 + $0x1a0] sm:$0xff]
    %v113 = vld [vmem:[#allocation6 + $0x1a8] sm:$0xff]
    %v114 = vld [vmem:[#allocation6 + $0x1b0] sm:$0xff]
    %v115 = vld [vmem:[#allocation6 + $0x1b8] sm:$0xff]
    %v116 = vld [vmem:[#allocation6 + $0x1c0] sm:$0xff]
    %v117 = vld [vmem:[#allocation6 + $0x1c8] sm:$0xff]
    %v118 = vld [vmem:[#allocation6 + $0x1d0] sm:$0xff]
    %v119 = vld [vmem:[#allocation6 + $0x1d8] sm:$0xff]
    %v120 = vld [vmem:[#allocation6 + $0x1e0] sm:$0xff]
    %v121 = vld [vmem:[#allocation6 + $0x1e8] sm:$0xff]
    %v122 = vld [vmem:[#allocation6 + $0x1f0] sm:$0xff]
    %v123 = vld [vmem:[#allocation6 + $0x1f8] sm:$0xff]
    %v124 = vand.u32 %v90, 4294901760
    %125 = vmatpush.msra.mxu0 %v124
    %v126 = vand.u32 %v88, 4294901760
    %127 = vmatpush.msra.mxu0 %v126
    %v128 = vand.u32 %v86, 4294901760
    %129 = vmatpush.msra.mxu0 %v128
    %v130 = vand.u32 %v84, 4294901760
    %131 = vmatpush.msra.mxu0 %v130
    %v132 = vand.u32 %v82, 4294901760
    %133 = vmatpush.msra.mxu0 %v132
    %v134 = vand.u32 %v80, 4294901760
    %135 = vmatpush.msra.mxu0 %v134
    %v136 = vand.u32 %v78, 4294901760
    %137 = vmatpush.msra.mxu0 %v136
    %v138 = vand.u32 %v76, 4294901760
    %139 = vmatpush.msra.mxu0 %v138
    %v140 = vand.u32 %v74, 4294901760
    %141 = vmatpush.msra.mxu0 %v140
    %v142 = vand.u32 %v72, 4294901760
    %143 = vmatpush.msra.mxu0 %v142
    %v144 = vand.u32 %v70, 4294901760
    %145 = vmatpush.msra.mxu0 %v144
    %v146 = vand.u32 %v68, 4294901760
    %147 = vmatpush.msra.mxu0 %v146
    %v148 = vand.u32 %v66, 4294901760
    %149 = vmatpush.msra.mxu0 %v148
    %v150 = vand.u32 %v64, 4294901760
    %151 = vmatpush.msra.mxu0 %v150
    %v152 = vand.u32 %v62, 4294901760
    %153 = vmatpush.msra.mxu0 %v152
    %v154 = vand.u32 %v60, 4294901760
    %155 = vmatpush.msra.mxu0 %v154
    %v156 = vand.u32 %v58, 4294901760
    %v157 = vsub.f32 %v58, %v156
    %v158 = vand.u32 %v157, 4294901760
    %v159 = vsub.f32 %v157, %v158
    %v160 = vand.u32 %v159, 4294901760
    %161 = vmatmul.f32.gmra.mxu0 %v160
    %v162 = vpop.f32.mrf.mxu0
    %v163 = vadd.f32 0.0, %v162
    %164 = vdwg.mxu0
    %v165 = vand.u32 %v90, 4294901760
    %v166 = vsub.f32 %v90, %v165
    %v167 = vand.u32 %v166, 4294901760
    %v168 = vsub.f32 %v166, %v167
    %v169 = vand.u32 %v168, 4294901760
    %170 = vmatpush.msra.mxu0 %v169
    %v171 = vand.u32 %v88, 4294901760
    %v172 = vsub.f32 %v88, %v171
    %v173 = vand.u32 %v172, 4294901760
    %v174 = vsub.f32 %v172, %v173
    %v175 = vand.u32 %v174, 4294901760
    %176 = vmatpush.msra.mxu0 %v175
    %v177 = vand.u32 %v86, 4294901760
    %v178 = vsub.f32 %v86, %v177
    %v179 = vand.u32 %v178, 4294901760
    %v180 = vsub.f32 %v178, %v179
    %v181 = vand.u32 %v180, 4294901760
    %182 = vmatpush.msra.mxu0 %v181
    %v183 = vand.u32 %v84, 4294901760
    %v184 = vsub.f32 %v84, %v183
    %v185 = vand.u32 %v184, 4294901760
    %v186 = vsub.f32 %v184, %v185
    %v187 = vand.u32 %v186, 4294901760
    %188 = vmatpush.msra.mxu0 %v187
    %v189 = vand.u32 %v82, 4294901760
    %v190 = vsub.f32 %v82, %v189
    %v191 = vand.u32 %v190, 4294901760
    %v192 = vsub.f32 %v190, %v191
    %v193 = vand.u32 %v192, 4294901760
    %194 = vmatpush.msra.mxu0 %v193
    %v195 = vand.u32 %v80, 4294901760
    %v196 = vsub.f32 %v80, %v195
    %v197 = vand.u32 %v196, 4294901760
    %v198 = vsub.f32 %v196, %v197
    %v199 = vand.u32 %v198, 4294901760
    %200 = vmatpush.msra.mxu0 %v199
    %v201 = vand.u32 %v78, 4294901760
    %v202 = vsub.f32 %v78, %v201
    %v203 = vand.u32 %v202, 4294901760
    %v204 = vsub.f32 %v202, %v203
    %v205 = vand.u32 %v204, 4294901760
    %206 = vmatpush.msra.mxu0 %v205
    %v207 = vand.u32 %v76, 4294901760
    %v208 = vsub.f32 %v76, %v207
    %v209 = vand.u32 %v208, 4294901760
    %v210 = vsub.f32 %v208, %v209
    %v211 = vand.u32 %v210, 4294901760
    %212 = vmatpush.msra.mxu0 %v211
    %v213 = vand.u32 %v74, 4294901760
    %v214 = vsub.f32 %v74, %v213
    %v215 = vand.u32 %v214, 4294901760
    %v216 = vsub.f32 %v214, %v215
    %v217 = vand.u32 %v216, 4294901760
    %218 = vmatpush.msra.mxu0 %v217
    %v219 = vand.u32 %v72, 4294901760
    %v220 = vsub.f32 %v72, %v219
    %v221 = vand.u32 %v220, 4294901760
    %v222 = vsub.f32 %v220, %v221
    %v223 = vand.u32 %v222, 4294901760
    %224 = vmatpush.msra.mxu0 %v223
    %v225 = vand.u32 %v70, 4294901760
    %v226 = vsub.f32 %v70, %v225
    %v227 = vand.u32 %v226, 4294901760
    %v228 = vsub.f32 %v226, %v227
    %v229 = vand.u32 %v228, 4294901760
    %230 = vmatpush.msra.mxu0 %v229
    %v231 = vand.u32 %v68, 4294901760
    %v232 = vsub.f32 %v68, %v231
    %v233 = vand.u32 %v232, 4294901760
    %v234 = vsub.f32 %v232, %v233
    %v235 = vand.u32 %v234, 4294901760
    %236 = vmatpush.msra.mxu0 %v235
    %v237 = vand.u32 %v66, 4294901760
    %v238 = vsub.f32 %v66, %v237
    %v239 = vand.u32 %v238, 4294901760
    %v240 = vsub.f32 %v238, %v239
    %v241 = vand.u32 %v240, 4294901760
    %242 = vmatpush.msra.mxu0 %v241
    %v243 = vand.u32 %v64, 4294901760
    %v244 = vsub.f32 %v64, %v243
    %v245 = vand.u32 %v244, 4294901760
    %v246 = vsub.f32 %v244, %v245
    %v247 = vand.u32 %v246, 4294901760
    %248 = vmatpush.msra.mxu0 %v247
    %v249 = vand.u32 %v62, 4294901760
    %v250 = vsub.f32 %v62, %v249
    %v251 = vand.u32 %v250, 4294901760
    %v252 = vsub.f32 %v250, %v251
    %v253 = vand.u32 %v252, 4294901760
    %254 = vmatpush.msra.mxu0 %v253
    %v255 = vand.u32 %v60, 4294901760
    %v256 = vsub.f32 %v60, %v255
    %v257 = vand.u32 %v256, 4294901760
    %v258 = vsub.f32 %v256, %v257
    %v259 = vand.u32 %v258, 4294901760
    %260 = vmatpush.msra.mxu0 %v259
    %v261 = vand.u32 %v58, 4294901760
    %262 = vmatmul.f32.gmra.mxu0 %v261
    %v263 = vpop.f32.mrf.mxu0
    %v264 = vadd.f32 %v163, %v263
    %265 = vdwg.mxu0
    %v266 = vand.u32 %v90, 4294901760
    %v267 = vsub.f32 %v90, %v266
    %268 = vmatpush.msra.mxu0 %v267
    %v269 = vand.u32 %v88, 4294901760
    %v270 = vsub.f32 %v88, %v269
    %271 = vmatpush.msra.mxu0 %v270
    %v272 = vand.u32 %v86, 4294901760
    %v273 = vsub.f32 %v86, %v272
    %274 = vmatpush.msra.mxu0 %v273
    %v275 = vand.u32 %v84, 4294901760
    %v276 = vsub.f32 %v84, %v275
    %277 = vmatpush.msra.mxu0 %v276
    %v278 = vand.u32 %v82, 4294901760
    %v279 = vsub.f32 %v82, %v278
    %280 = vmatpush.msra.mxu0 %v279
    %v281 = vand.u32 %v80, 4294901760
    %v282 = vsub.f32 %v80, %v281
    %283 = vmatpush.msra.mxu0 %v282
    %v284 = vand.u32 %v78, 4294901760
    %v285 = vsub.f32 %v78, %v284
    %286 = vmatpush.msra.mxu0 %v285
    %v287 = vand.u32 %v76, 4294901760
    %v288 = vsub.f32 %v76, %v287
    %289 = vmatpush.msra.mxu0 %v288
    %v290 = vand.u32 %v74, 4294901760
    %v291 = vsub.f32 %v74, %v290
    %292 = vmatpush.msra.mxu0 %v291
    %v293 = vand.u32 %v72, 4294901760
    %v294 = vsub.f32 %v72, %v293
    %295 = vmatpush.msra.mxu0 %v294
    %v296 = vand.u32 %v70, 4294901760
    %v297 = vsub.f32 %v70, %v296
    %298 = vmatpush.msra.mxu0 %v297
    %v299 = vand.u32 %v68, 4294901760
    %v300 = vsub.f32 %v68, %v299
    %301 = vmatpush.msra.mxu0 %v300
    %v302 = vand.u32 %v66, 4294901760
    %v303 = vsub.f32 %v66, %v302
    %304 = vmatpush.msra.mxu0 %v303
    %v305 = vand.u32 %v64, 4294901760
    %v306 = vsub.f32 %v64, %v305
    %307 = vmatpush.msra.mxu0 %v306
    %v308 = vand.u32 %v62, 4294901760
    %v309 = vsub.f32 %v62, %v308
    %310 = vmatpush.msra.mxu0 %v309
    %v311 = vand.u32 %v60, 4294901760
    %v312 = vsub.f32 %v60, %v311
    %313 = vmatpush.msra.mxu0 %v312
    %v314 = vand.u32 %v58, 4294901760
    %v315 = vsub.f32 %v58, %v314
    %316 = vmatmul.f32.gmra.mxu0 %v315
    %v317 = vpop.f32.mrf.mxu0
    %v318 = vadd.f32 %v264, %v317
    %319 = vdwg.mxu0
    %v320 = vand.u32 %v90, 4294901760
    %321 = vmatpush.msra.mxu0 %v320
    %v322 = vand.u32 %v88, 4294901760
    %323 = vmatpush.msra.mxu0 %v322
    %v324 = vand.u32 %v86, 4294901760
    %325 = vmatpush.msra.mxu0 %v324
    %v326 = vand.u32 %v84, 4294901760
    %327 = vmatpush.msra.mxu0 %v326
    %v328 = vand.u32 %v82, 4294901760
    %329 = vmatpush.msra.mxu0 %v328
    %v330 = vand.u32 %v80, 4294901760
    %331 = vmatpush.msra.mxu0 %v330
    %v332 = vand.u32 %v78, 4294901760
    %333 = vmatpush.msra.mxu0 %v332
    %v334 = vand.u32 %v76, 4294901760
    %335 = vmatpush.msra.mxu0 %v334
    %v336 = vand.u32 %v74, 4294901760
    %337 = vmatpush.msra.mxu0 %v336
    %v338 = vand.u32 %v72, 4294901760
    %339 = vmatpush.msra.mxu0 %v338
    %v340 = vand.u32 %v70, 4294901760
    %341 = vmatpush.msra.mxu0 %v340
    %v342 = vand.u32 %v68, 4294901760
    %343 = vmatpush.msra.mxu0 %v342
    %v344 = vand.u32 %v66, 4294901760
    %345 = vmatpush.msra.mxu0 %v344
    %v346 = vand.u32 %v64, 4294901760
    %347 = vmatpush.msra.mxu0 %v346
    %v348 = vand.u32 %v62, 4294901760
    %349 = vmatpush.msra.mxu0 %v348
    %v350 = vand.u32 %v60, 4294901760
    %351 = vmatpush.msra.mxu0 %v350
    %v352 = vand.u32 %v58, 4294901760
    %v353 = vsub.f32 %v58, %v352
    %v354 = vand.u32 %v353, 4294901760
    %355 = vmatmul.f32.gmra.mxu0 %v354
    %v356 = vpop.f32.mrf.mxu0
    %v357 = vadd.f32 %v318, %v356
    %358 = vdwg.mxu0
    %v359 = vand.u32 %v90, 4294901760
    %v360 = vsub.f32 %v90, %v359
    %v361 = vand.u32 %v360, 4294901760
    %362 = vmatpush.msra.mxu0 %v361
    %v363 = vand.u32 %v88, 4294901760
    %v364 = vsub.f32 %v88, %v363
    %v365 = vand.u32 %v364, 4294901760
    %366 = vmatpush.msra.mxu0 %v365
    %v367 = vand.u32 %v86, 4294901760
    %v368 = vsub.f32 %v86, %v367
    %v369 = vand.u32 %v368, 4294901760
    %370 = vmatpush.msra.mxu0 %v369
    %v371 = vand.u32 %v84, 4294901760
    %v372 = vsub.f32 %v84, %v371
    %v373 = vand.u32 %v372, 4294901760
    %374 = vmatpush.msra.mxu0 %v373
    %v375 = vand.u32 %v82, 4294901760
    %v376 = vsub.f32 %v82, %v375
    %v377 = vand.u32 %v376, 4294901760
    %378 = vmatpush.msra.mxu0 %v377
    %v379 = vand.u32 %v80, 4294901760
    %v380 = vsub.f32 %v80, %v379
    %v381 = vand.u32 %v380, 4294901760
    %382 = vmatpush.msra.mxu0 %v381
    %v383 = vand.u32 %v78, 4294901760
    %v384 = vsub.f32 %v78, %v383
    %v385 = vand.u32 %v384, 4294901760
    %386 = vmatpush.msra.mxu0 %v385
    %v387 = vand.u32 %v76, 4294901760
    %v388 = vsub.f32 %v76, %v387
    %v389 = vand.u32 %v388, 4294901760
    %390 = vmatpush.msra.mxu0 %v389
    %v391 = vand.u32 %v74, 4294901760
    %v392 = vsub.f32 %v74, %v391
    %v393 = vand.u32 %v392, 4294901760
    %394 = vmatpush.msra.mxu0 %v393
    %v395 = vand.u32 %v72, 4294901760
    %v396 = vsub.f32 %v72, %v395
    %v397 = vand.u32 %v396, 4294901760
    %398 = vmatpush.msra.mxu0 %v397
    %v399 = vand.u32 %v70, 4294901760
    %v400 = vsub.f32 %v70, %v399
    %v401 = vand.u32 %v400, 4294901760
    %402 = vmatpush.msra.mxu0 %v401
    %v403 = vand.u32 %v68, 4294901760
    %v404 = vsub.f32 %v68, %v403
    %v405 = vand.u32 %v404, 4294901760
    %406 = vmatpush.msra.mxu0 %v405
    %v407 = vand.u32 %v66, 4294901760
    %v408 = vsub.f32 %v66, %v407
    %v409 = vand.u32 %v408, 4294901760
    %410 = vmatpush.msra.mxu0 %v409
    %v411 = vand.u32 %v64, 4294901760
    %v412 = vsub.f32 %v64, %v411
    %v413 = vand.u32 %v412, 4294901760
    %414 = vmatpush.msra.mxu0 %v413
    %v415 = vand.u32 %v62, 4294901760
    %v416 = vsub.f32 %v62, %v415
    %v417 = vand.u32 %v416, 4294901760
    %418 = vmatpush.msra.mxu0 %v417
    %v419 = vand.u32 %v60, 4294901760
    %v420 = vsub.f32 %v60, %v419
    %v421 = vand.u32 %v420, 4294901760
    %422 = vmatpush.msra.mxu0 %v421
    %v423 = vand.u32 %v58, 4294901760
    %424 = vmatmul.f32.gmra.mxu0 %v423
    %v425 = vpop.f32.mrf.mxu0
    %v426 = vadd.f32 %v357, %v425
    %427 = vdwg.mxu0
    %v428 = vand.u32 %v90, 4294901760
    %429 = vmatpush.msra.mxu0 %v428
    %v430 = vand.u32 %v88, 4294901760
    %431 = vmatpush.msra.mxu0 %v430
    %v432 = vand.u32 %v86, 4294901760
    %433 = vmatpush.msra.mxu0 %v432
    %v434 = vand.u32 %v84, 4294901760
    %435 = vmatpush.msra.mxu0 %v434
    %v436 = vand.u32 %v82, 4294901760
    %437 = vmatpush.msra.mxu0 %v436
    %v438 = vand.u32 %v80, 4294901760
    %439 = vmatpush.msra.mxu0 %v438
    %v440 = vand.u32 %v78, 4294901760
    %441 = vmatpush.msra.mxu0 %v440
    %v442 = vand.u32 %v76, 4294901760
    %443 = vmatpush.msra.mxu0 %v442
    %v444 = vand.u32 %v74, 4294901760
    %445 = vmatpush.msra.mxu0 %v444
    %v446 = vand.u32 %v72, 4294901760
    %447 = vmatpush.msra.mxu0 %v446
    %v448 = vand.u32 %v70, 4294901760
    %449 = vmatpush.msra.mxu0 %v448
    %v450 = vand.u32 %v68, 4294901760
    %451 = vmatpush.msra.mxu0 %v450
    %v452 = vand.u32 %v66, 4294901760
    %453 = vmatpush.msra.mxu0 %v452
    %v454 = vand.u32 %v64, 4294901760
    %455 = vmatpush.msra.mxu0 %v454
    %v456 = vand.u32 %v62, 4294901760
    %457 = vmatpush.msra.mxu0 %v456
    %v458 = vand.u32 %v60, 4294901760
    %459 = vmatpush.msra.mxu0 %v458
    %v460 = vand.u32 %v58, 4294901760
    %461 = vmatmul.f32.gmra.mxu0 %v460
    %v462 = vpop.f32.mrf.mxu0
    %v463 = vadd.f32 %v426, %v462
    %464 = vdwg.mxu0
    %v465 = vand.u32 %v122, 4294901760
    %466 = vmatpush.msra.mxu0 %v465
    %v467 = vand.u32 %v120, 4294901760
    %468 = vmatpush.msra.mxu0 %v467
    %v469 = vand.u32 %v118, 4294901760
    %470 = vmatpush.msra.mxu0 %v469
    %v471 = vand.u32 %v116, 4294901760
    %472 = vmatpush.msra.mxu0 %v471
    %v473 = vand.u32 %v114, 4294901760
    %474 = vmatpush.msra.mxu0 %v473
    %v475 = vand.u32 %v112, 4294901760
    %476 = vmatpush.msra.mxu0 %v475
    %v477 = vand.u32 %v110, 4294901760
    %478 = vmatpush.msra.mxu0 %v477
    %v479 = vand.u32 %v108, 4294901760
    %480 = vmatpush.msra.mxu0 %v479
    %v481 = vand.u32 %v106, 4294901760
    %482 = vmatpush.msra.mxu0 %v481
    %v483 = vand.u32 %v104, 4294901760
    %484 = vmatpush.msra.mxu0 %v483
    %v485 = vand.u32 %v102, 4294901760
    %486 = vmatpush.msra.mxu0 %v485
    %v487 = vand.u32 %v100, 4294901760
    %488 = vmatpush.msra.mxu0 %v487
    %v489 = vand.u32 %v98, 4294901760
    %490 = vmatpush.msra.mxu0 %v489
    %v491 = vand.u32 %v96, 4294901760
    %492 = vmatpush.msra.mxu0 %v491
    %v493 = vand.u32 %v94, 4294901760
    %494 = vmatpush.msra.mxu0 %v493
    %v495 = vand.u32 %v92, 4294901760
    %496 = vmatpush.msra.mxu0 %v495
    %v497 = vand.u32 %v59, 4294901760
    %v498 = vsub.f32 %v59, %v497
    %v499 = vand.u32 %v498, 4294901760
    %v500 = vsub.f32 %v498, %v499
    %v501 = vand.u32 %v500, 4294901760
    %502 = vmatmul.f32.gmra.mxu0 %v501
    %v503 = vpop.f32.mrf.mxu0
    %v504 = vadd.f32 %v463, %v503
    %505 = vdwg.mxu0
    %v506 = vand.u32 %v122, 4294901760
    %v507 = vsub.f32 %v122, %v506
    %v508 = vand.u32 %v507, 4294901760
    %v509 = vsub.f32 %v507, %v508
    %v510 = vand.u32 %v509, 4294901760
    %511 = vmatpush.msra.mxu0 %v510
    %v512 = vand.u32 %v120, 4294901760
    %v513 = vsub.f32 %v120, %v512
    %v514 = vand.u32 %v513, 4294901760
    %v515 = vsub.f32 %v513, %v514
    %v516 = vand.u32 %v515, 4294901760
    %517 = vmatpush.msra.mxu0 %v516
    %v518 = vand.u32 %v118, 4294901760
    %v519 = vsub.f32 %v118, %v518
    %v520 = vand.u32 %v519, 4294901760
    %v521 = vsub.f32 %v519, %v520
    %v522 = vand.u32 %v521, 4294901760
    %523 = vmatpush.msra.mxu0 %v522
    %v524 = vand.u32 %v116, 4294901760
    %v525 = vsub.f32 %v116, %v524
    %v526 = vand.u32 %v525, 4294901760
    %v527 = vsub.f32 %v525, %v526
    %v528 = vand.u32 %v527, 4294901760
    %529 = vmatpush.msra.mxu0 %v528
    %v530 = vand.u32 %v114, 4294901760
    %v531 = vsub.f32 %v114, %v530
    %v532 = vand.u32 %v531, 4294901760
    %v533 = vsub.f32 %v531, %v532
    %v534 = vand.u32 %v533, 4294901760
    %535 = vmatpush.msra.mxu0 %v534
    %v536 = vand.u32 %v112, 4294901760
    %v537 = vsub.f32 %v112, %v536
    %v538 = vand.u32 %v537, 4294901760
    %v539 = vsub.f32 %v537, %v538
    %v540 = vand.u32 %v539, 4294901760
    %541 = vmatpush.msra.mxu0 %v540
    %v542 = vand.u32 %v110, 4294901760
    %v543 = vsub.f32 %v110, %v542
    %v544 = vand.u32 %v543, 4294901760
    %v545 = vsub.f32 %v543, %v544
    %v546 = vand.u32 %v545, 4294901760
    %547 = vmatpush.msra.mxu0 %v546
    %v548 = vand.u32 %v108, 4294901760
    %v549 = vsub.f32 %v108, %v548
    %v550 = vand.u32 %v549, 4294901760
    %v551 = vsub.f32 %v549, %v550
    %v552 = vand.u32 %v551, 4294901760
    %553 = vmatpush.msra.mxu0 %v552
    %v554 = vand.u32 %v106, 4294901760
    %v555 = vsub.f32 %v106, %v554
    %v556 = vand.u32 %v555, 4294901760
    %v557 = vsub.f32 %v555, %v556
    %v558 = vand.u32 %v557, 4294901760
    %559 = vmatpush.msra.mxu0 %v558
    %v560 = vand.u32 %v104, 4294901760
    %v561 = vsub.f32 %v104, %v560
    %v562 = vand.u32 %v561, 4294901760
    %v563 = vsub.f32 %v561, %v562
    %v564 = vand.u32 %v563, 4294901760
    %565 = vmatpush.msra.mxu0 %v564
    %v566 = vand.u32 %v102, 4294901760
    %v567 = vsub.f32 %v102, %v566
    %v568 = vand.u32 %v567, 4294901760
    %v569 = vsub.f32 %v567, %v568
    %v570 = vand.u32 %v569, 4294901760
    %571 = vmatpush.msra.mxu0 %v570
    %v572 = vand.u32 %v100, 4294901760
    %v573 = vsub.f32 %v100, %v572
    %v574 = vand.u32 %v573, 4294901760
    %v575 = vsub.f32 %v573, %v574
    %v576 = vand.u32 %v575, 4294901760
    %577 = vmatpush.msra.mxu0 %v576
    %v578 = vand.u32 %v98, 4294901760
    %v579 = vsub.f32 %v98, %v578
    %v580 = vand.u32 %v579, 4294901760
    %v581 = vsub.f32 %v579, %v580
    %v582 = vand.u32 %v581, 4294901760
    %583 = vmatpush.msra.mxu0 %v582
    %v584 = vand.u32 %v96, 4294901760
    %v585 = vsub.f32 %v96, %v584
    %v586 = vand.u32 %v585, 4294901760
    %v587 = vsub.f32 %v585, %v586
    %v588 = vand.u32 %v587, 4294901760
    %589 = vmatpush.msra.mxu0 %v588
    %v590 = vand.u32 %v94, 4294901760
    %v591 = vsub.f32 %v94, %v590
    %v592 = vand.u32 %v591, 4294901760
    %v593 = vsub.f32 %v591, %v592
    %v594 = vand.u32 %v593, 4294901760
    %595 = vmatpush.msra.mxu0 %v594
    %v596 = vand.u32 %v92, 4294901760
    %v597 = vsub.f32 %v92, %v596
    %v598 = vand.u32 %v597, 4294901760
    %v599 = vsub.f32 %v597, %v598
    %v600 = vand.u32 %v599, 4294901760
    %601 = vmatpush.msra.mxu0 %v600
    %v602 = vand.u32 %v59, 4294901760
    %603 = vmatmul.f32.gmra.mxu0 %v602
    %v604 = vpop.f32.mrf.mxu0
    %v605 = vadd.f32 %v504, %v604
    %606 = vdwg.mxu0
    %v607 = vand.u32 %v122, 4294901760
    %v608 = vsub.f32 %v122, %v607
    %609 = vmatpush.msra.mxu0 %v608
    %v610 = vand.u32 %v120, 4294901760
    %v611 = vsub.f32 %v120, %v610
    %612 = vmatpush.msra.mxu0 %v611
    %v613 = vand.u32 %v118, 4294901760
    %v614 = vsub.f32 %v118, %v613
    %615 = vmatpush.msra.mxu0 %v614
    %v616 = vand.u32 %v116, 4294901760
    %v617 = vsub.f32 %v116, %v616
    %618 = vmatpush.msra.mxu0 %v617
    %v619 = vand.u32 %v114, 4294901760
    %v620 = vsub.f32 %v114, %v619
    %621 = vmatpush.msra.mxu0 %v620
    %v622 = vand.u32 %v112, 4294901760
    %v623 = vsub.f32 %v112, %v622
    %624 = vmatpush.msra.mxu0 %v623
    %v625 = vand.u32 %v110, 4294901760
    %v626 = vsub.f32 %v110, %v625
    %627 = vmatpush.msra.mxu0 %v626
    %v628 = vand.u32 %v108, 4294901760
    %v629 = vsub.f32 %v108, %v628
    %630 = vmatpush.msra.mxu0 %v629
    %v631 = vand.u32 %v106, 4294901760
    %v632 = vsub.f32 %v106, %v631
    %633 = vmatpush.msra.mxu0 %v632
    %v634 = vand.u32 %v104, 4294901760
    %v635 = vsub.f32 %v104, %v634
    %636 = vmatpush.msra.mxu0 %v635
    %v637 = vand.u32 %v102, 4294901760
    %v638 = vsub.f32 %v102, %v637
    %639 = vmatpush.msra.mxu0 %v638
    %v640 = vand.u32 %v100, 4294901760
    %v641 = vsub.f32 %v100, %v640
    %642 = vmatpush.msra.mxu0 %v641
    %v643 = vand.u32 %v98, 4294901760
    %v644 = vsub.f32 %v98, %v643
    %645 = vmatpush.msra.mxu0 %v644
    %v646 = vand.u32 %v96, 4294901760
    %v647 = vsub.f32 %v96, %v646
    %648 = vmatpush.msra.mxu0 %v647
    %v649 = vand.u32 %v94, 4294901760
    %v650 = vsub.f32 %v94, %v649
    %651 = vmatpush.msra.mxu0 %v650
    %v652 = vand.u32 %v92, 4294901760
    %v653 = vsub.f32 %v92, %v652
    %654 = vmatpush.msra.mxu0 %v653
    %v655 = vand.u32 %v59, 4294901760
    %v656 = vsub.f32 %v59, %v655
    %657 = vmatmul.f32.gmra.mxu0 %v656
    %v658 = vpop.f32.mrf.mxu0
    %v659 = vadd.f32 %v605, %v658
    %660 = vdwg.mxu0
    %v661 = vand.u32 %v122, 4294901760
    %662 = vmatpush.msra.mxu0 %v661
    %v663 = vand.u32 %v120, 4294901760
    %664 = vmatpush.msra.mxu0 %v663
    %v665 = vand.u32 %v118, 4294901760
    %666 = vmatpush.msra.mxu0 %v665
    %v667 = vand.u32 %v116, 4294901760
    %668 = vmatpush.msra.mxu0 %v667
    %v669 = vand.u32 %v114, 4294901760
    %670 = vmatpush.msra.mxu0 %v669
    %v671 = vand.u32 %v112, 4294901760
    %672 = vmatpush.msra.mxu0 %v671
    %v673 = vand.u32 %v110, 4294901760
    %674 = vmatpush.msra.mxu0 %v673
    %v675 = vand.u32 %v108, 4294901760
    %676 = vmatpush.msra.mxu0 %v675
    %v677 = vand.u32 %v106, 4294901760
    %678 = vmatpush.msra.mxu0 %v677
    %v679 = vand.u32 %v104, 4294901760
    %680 = vmatpush.msra.mxu0 %v679
    %v681 = vand.u32 %v102, 4294901760
    %682 = vmatpush.msra.mxu0 %v681
    %v683 = vand.u32 %v100, 4294901760
    %684 = vmatpush.msra.mxu0 %v683
    %v685 = vand.u32 %v98, 4294901760
    %686 = vmatpush.msra.mxu0 %v685
    %v687 = vand.u32 %v96, 4294901760
    %688 = vmatpush.msra.mxu0 %v687
    %v689 = vand.u32 %v94, 4294901760
    %690 = vmatpush.msra.mxu0 %v689
    %v691 = vand.u32 %v92, 4294901760
    %692 = vmatpush.msra.mxu0 %v691
    %v693 = vand.u32 %v59, 4294901760
    %v694 = vsub.f32 %v59, %v693
    %v695 = vand.u32 %v694, 4294901760
    %696 = vmatmul.f32.gmra.mxu0 %v695
    %v697 = vpop.f32.mrf.mxu0
    %v698 = vadd.f32 %v659, %v697
    %699 = vdwg.mxu0
    %v700 = vand.u32 %v122, 4294901760
    %v701 = vsub.f32 %v122, %v700
    %v702 = vand.u32 %v701, 4294901760
    %703 = vmatpush.msra.mxu0 %v702
    %v704 = vand.u32 %v120, 4294901760
    %v705 = vsub.f32 %v120, %v704
    %v706 = vand.u32 %v705, 4294901760
    %707 = vmatpush.msra.mxu0 %v706
    %v708 = vand.u32 %v118, 4294901760
    %v709 = vsub.f32 %v118, %v708
    %v710 = vand.u32 %v709, 4294901760
    %711 = vmatpush.msra.mxu0 %v710
    %v712 = vand.u32 %v116, 4294901760
    %v713 = vsub.f32 %v116, %v712
    %v714 = vand.u32 %v713, 4294901760
    %715 = vmatpush.msra.mxu0 %v714
    %v716 = vand.u32 %v114, 4294901760
    %v717 = vsub.f32 %v114, %v716
    %v718 = vand.u32 %v717, 4294901760
    %719 = vmatpush.msra.mxu0 %v718
    %v720 = vand.u32 %v112, 4294901760
    %v721 = vsub.f32 %v112, %v720
    %v722 = vand.u32 %v721, 4294901760
    %723 = vmatpush.msra.mxu0 %v722
    %v724 = vand.u32 %v110, 4294901760
    %v725 = vsub.f32 %v110, %v724
    %v726 = vand.u32 %v725, 4294901760
    %727 = vmatpush.msra.mxu0 %v726
    %v728 = vand.u32 %v108, 4294901760
    %v729 = vsub.f32 %v108, %v728
    %v730 = vand.u32 %v729, 4294901760
    %731 = vmatpush.msra.mxu0 %v730
    %v732 = vand.u32 %v106, 4294901760
    %v733 = vsub.f32 %v106, %v732
    %v734 = vand.u32 %v733, 4294901760
    %735 = vmatpush.msra.mxu0 %v734
    %v736 = vand.u32 %v104, 4294901760
    %v737 = vsub.f32 %v104, %v736
    %v738 = vand.u32 %v737, 4294901760
    %739 = vmatpush.msra.mxu0 %v738
    %v740 = vand.u32 %v102, 4294901760
    %v741 = vsub.f32 %v102, %v740
    %v742 = vand.u32 %v741, 4294901760
    %743 = vmatpush.msra.mxu0 %v742
    %v744 = vand.u32 %v100, 4294901760
    %v745 = vsub.f32 %v100, %v744
    %v746 = vand.u32 %v745, 4294901760
    %747 = vmatpush.msra.mxu0 %v746
    %v748 = vand.u32 %v98, 4294901760
    %v749 = vsub.f32 %v98, %v748
    %v750 = vand.u32 %v749, 4294901760
    %751 = vmatpush.msra.mxu0 %v750
    %v752 = vand.u32 %v96, 4294901760
    %v753 = vsub.f32 %v96, %v752
    %v754 = vand.u32 %v753, 4294901760
    %755 = vmatpush.msra.mxu0 %v754
    %v756 = vand.u32 %v94, 4294901760
    %v757 = vsub.f32 %v94, %v756
    %v758 = vand.u32 %v757, 4294901760
    %759 = vmatpush.msra.mxu0 %v758
    %v760 = vand.u32 %v92, 4294901760
    %v761 = vsub.f32 %v92, %v760
    %v762 = vand.u32 %v761, 4294901760
    %763 = vmatpush.msra.mxu0 %v762
    %v764 = vand.u32 %v59, 4294901760
    %765 = vmatmul.f32.gmra.mxu0 %v764
    %v766 = vpop.f32.mrf.mxu0
    %v767 = vadd.f32 %v698, %v766
    %768 = vdwg.mxu0
    %v769 = vand.u32 %v122, 4294901760
    %770 = vmatpush.msra.mxu0 %v769
    %v771 = vand.u32 %v120, 4294901760
    %772 = vmatpush.msra.mxu0 %v771
    %v773 = vand.u32 %v118, 4294901760
    %774 = vmatpush.msra.mxu0 %v773
    %v775 = vand.u32 %v116, 4294901760
    %776 = vmatpush.msra.mxu0 %v775
    %v777 = vand.u32 %v114, 4294901760
    %778 = vmatpush.msra.mxu0 %v777
    %v779 = vand.u32 %v112, 4294901760
    %780 = vmatpush.msra.mxu0 %v779
    %v781 = vand.u32 %v110, 4294901760
    %782 = vmatpush.msra.mxu0 %v781
    %v783 = vand.u32 %v108, 4294901760
    %784 = vmatpush.msra.mxu0 %v783
    %v785 = vand.u32 %v106, 4294901760
    %786 = vmatpush.msra.mxu0 %v785
    %v787 = vand.u32 %v104, 4294901760
    %788 = vmatpush.msra.mxu0 %v787
    %v789 = vand.u32 %v102, 4294901760
    %790 = vmatpush.msra.mxu0 %v789
    %v791 = vand.u32 %v100, 4294901760
    %792 = vmatpush.msra.mxu0 %v791
    %v793 = vand.u32 %v98, 4294901760
    %794 = vmatpush.msra.mxu0 %v793
    %v795 = vand.u32 %v96, 4294901760
    %796 = vmatpush.msra.mxu0 %v795
    %v797 = vand.u32 %v94, 4294901760
    %798 = vmatpush.msra.mxu0 %v797
    %v799 = vand.u32 %v92, 4294901760
    %800 = vmatpush.msra.mxu0 %v799
    %v801 = vand.u32 %v59, 4294901760
    %802 = vmatmul.f32.gmra.mxu0 %v801
    %v803 = vpop.f32.mrf.mxu0
    %v804 = vadd.f32 %v767, %v803
    %805 = vdwg.mxu0
    %v806 = vand.u32 %v91, 4294901760
    %807 = vmatpush.msra.mxu0 %v806
    %v808 = vand.u32 %v89, 4294901760
    %809 = vmatpush.msra.mxu0 %v808
    %v810 = vand.u32 %v87, 4294901760
    %811 = vmatpush.msra.mxu0 %v810
    %v812 = vand.u32 %v85, 4294901760
    %813 = vmatpush.msra.mxu0 %v812
    %v814 = vand.u32 %v83, 4294901760
    %815 = vmatpush.msra.mxu0 %v814
    %v816 = vand.u32 %v81, 4294901760
    %817 = vmatpush.msra.mxu0 %v816
    %v818 = vand.u32 %v79, 4294901760
    %819 = vmatpush.msra.mxu0 %v818
    %v820 = vand.u32 %v77, 4294901760
    %821 = vmatpush.msra.mxu0 %v820
    %v822 = vand.u32 %v75, 4294901760
    %823 = vmatpush.msra.mxu0 %v822
    %v824 = vand.u32 %v73, 4294901760
    %825 = vmatpush.msra.mxu0 %v824
    %v826 = vand.u32 %v71, 4294901760
    %827 = vmatpush.msra.mxu0 %v826
    %v828 = vand.u32 %v69, 4294901760
    %829 = vmatpush.msra.mxu0 %v828
    %v830 = vand.u32 %v67, 4294901760
    %831 = vmatpush.msra.mxu0 %v830
    %v832 = vand.u32 %v65, 4294901760
    %833 = vmatpush.msra.mxu0 %v832
    %v834 = vand.u32 %v63, 4294901760
    %835 = vmatpush.msra.mxu0 %v834
    %v836 = vand.u32 %v61, 4294901760
    %837 = vmatpush.msra.mxu0 %v836
    %v838 = vand.u32 %v58, 4294901760
    %v839 = vsub.f32 %v58, %v838
    %v840 = vand.u32 %v839, 4294901760
    %v841 = vsub.f32 %v839, %v840
    %v842 = vand.u32 %v841, 4294901760
    %843 = vmatmul.f32.gmra.mxu0 %v842
    %v844 = vpop.f32.mrf.mxu0
    %v845 = vadd.f32 0.0, %v844
    %846 = vdwg.mxu0
    %v847 = vand.u32 %v91, 4294901760
    %v848 = vsub.f32 %v91, %v847
    %v849 = vand.u32 %v848, 4294901760
    %v850 = vsub.f32 %v848, %v849
    %v851 = vand.u32 %v850, 4294901760
    %852 = vmatpush.msra.mxu0 %v851
    %v853 = vand.u32 %v89, 4294901760
    %v854 = vsub.f32 %v89, %v853
    %v855 = vand.u32 %v854, 4294901760
    %v856 = vsub.f32 %v854, %v855
    %v857 = vand.u32 %v856, 4294901760
    %858 = vmatpush.msra.mxu0 %v857
    %v859 = vand.u32 %v87, 4294901760
    %v860 = vsub.f32 %v87, %v859
    %v861 = vand.u32 %v860, 4294901760
    %v862 = vsub.f32 %v860, %v861
    %v863 = vand.u32 %v862, 4294901760
    %864 = vmatpush.msra.mxu0 %v863
    %v865 = vand.u32 %v85, 4294901760
    %v866 = vsub.f32 %v85, %v865
    %v867 = vand.u32 %v866, 4294901760
    %v868 = vsub.f32 %v866, %v867
    %v869 = vand.u32 %v868, 4294901760
    %870 = vmatpush.msra.mxu0 %v869
    %v871 = vand.u32 %v83, 4294901760
    %v872 = vsub.f32 %v83, %v871
    %v873 = vand.u32 %v872, 4294901760
    %v874 = vsub.f32 %v872, %v873
    %v875 = vand.u32 %v874, 4294901760
    %876 = vmatpush.msra.mxu0 %v875
    %v877 = vand.u32 %v81, 4294901760
    %v878 = vsub.f32 %v81, %v877
    %v879 = vand.u32 %v878, 4294901760
    %v880 = vsub.f32 %v878, %v879
    %v881 = vand.u32 %v880, 4294901760
    %882 = vmatpush.msra.mxu0 %v881
    %v883 = vand.u32 %v79, 4294901760
    %v884 = vsub.f32 %v79, %v883
    %v885 = vand.u32 %v884, 4294901760
    %v886 = vsub.f32 %v884, %v885
    %v887 = vand.u32 %v886, 4294901760
    %888 = vmatpush.msra.mxu0 %v887
    %v889 = vand.u32 %v77, 4294901760
    %v890 = vsub.f32 %v77, %v889
    %v891 = vand.u32 %v890, 4294901760
    %v892 = vsub.f32 %v890, %v891
    %v893 = vand.u32 %v892, 4294901760
    %894 = vmatpush.msra.mxu0 %v893
    %v895 = vand.u32 %v75, 4294901760
    %v896 = vsub.f32 %v75, %v895
    %v897 = vand.u32 %v896, 4294901760
    %v898 = vsub.f32 %v896, %v897
    %v899 = vand.u32 %v898, 4294901760
    %900 = vmatpush.msra.mxu0 %v899
    %v901 = vand.u32 %v73, 4294901760
    %v902 = vsub.f32 %v73, %v901
    %v903 = vand.u32 %v902, 4294901760
    %v904 = vsub.f32 %v902, %v903
    %v905 = vand.u32 %v904, 4294901760
    %906 = vmatpush.msra.mxu0 %v905
    %v907 = vand.u32 %v71, 4294901760
    %v908 = vsub.f32 %v71, %v907
    %v909 = vand.u32 %v908, 4294901760
    %v910 = vsub.f32 %v908, %v909
    %v911 = vand.u32 %v910, 4294901760
    %912 = vmatpush.msra.mxu0 %v911
    %v913 = vand.u32 %v69, 4294901760
    %v914 = vsub.f32 %v69, %v913
    %v915 = vand.u32 %v914, 4294901760
    %v916 = vsub.f32 %v914, %v915
    %v917 = vand.u32 %v916, 4294901760
    %918 = vmatpush.msra.mxu0 %v917
    %v919 = vand.u32 %v67, 4294901760
    %v920 = vsub.f32 %v67, %v919
    %v921 = vand.u32 %v920, 4294901760
    %v922 = vsub.f32 %v920, %v921
    %v923 = vand.u32 %v922, 4294901760
    %924 = vmatpush.msra.mxu0 %v923
    %v925 = vand.u32 %v65, 4294901760
    %v926 = vsub.f32 %v65, %v925
    %v927 = vand.u32 %v926, 4294901760
    %v928 = vsub.f32 %v926, %v927
    %v929 = vand.u32 %v928, 4294901760
    %930 = vmatpush.msra.mxu0 %v929
    %v931 = vand.u32 %v63, 4294901760
    %v932 = vsub.f32 %v63, %v931
    %v933 = vand.u32 %v932, 4294901760
    %v934 = vsub.f32 %v932, %v933
    %v935 = vand.u32 %v934, 4294901760
    %936 = vmatpush.msra.mxu0 %v935
    %v937 = vand.u32 %v61, 4294901760
    %v938 = vsub.f32 %v61, %v937
    %v939 = vand.u32 %v938, 4294901760
    %v940 = vsub.f32 %v938, %v939
    %v941 = vand.u32 %v940, 4294901760
    %942 = vmatpush.msra.mxu0 %v941
    %v943 = vand.u32 %v58, 4294901760
    %944 = vmatmul.f32.gmra.mxu0 %v943
    %v945 = vpop.f32.mrf.mxu0
    %v946 = vadd.f32 %v845, %v945
    %947 = vdwg.mxu0
    %v948 = vand.u32 %v91, 4294901760
    %v949 = vsub.f32 %v91, %v948
    %950 = vmatpush.msra.mxu0 %v949
    %v951 = vand.u32 %v89, 4294901760
    %v952 = vsub.f32 %v89, %v951
    %953 = vmatpush.msra.mxu0 %v952
    %v954 = vand.u32 %v87, 4294901760
    %v955 = vsub.f32 %v87, %v954
    %956 = vmatpush.msra.mxu0 %v955
    %v957 = vand.u32 %v85, 4294901760
    %v958 = vsub.f32 %v85, %v957
    %959 = vmatpush.msra.mxu0 %v958
    %v960 = vand.u32 %v83, 4294901760
    %v961 = vsub.f32 %v83, %v960
    %962 = vmatpush.msra.mxu0 %v961
    %v963 = vand.u32 %v81, 4294901760
    %v964 = vsub.f32 %v81, %v963
    %965 = vmatpush.msra.mxu0 %v964
    %v966 = vand.u32 %v79, 4294901760
    %v967 = vsub.f32 %v79, %v966
    %968 = vmatpush.msra.mxu0 %v967
    %v969 = vand.u32 %v77, 4294901760
    %v970 = vsub.f32 %v77, %v969
    %971 = vmatpush.msra.mxu0 %v970
    %v972 = vand.u32 %v75, 4294901760
    %v973 = vsub.f32 %v75, %v972
    %974 = vmatpush.msra.mxu0 %v973
    %v975 = vand.u32 %v73, 4294901760
    %v976 = vsub.f32 %v73, %v975
    %977 = vmatpush.msra.mxu0 %v976
    %v978 = vand.u32 %v71, 4294901760
    %v979 = vsub.f32 %v71, %v978
    %980 = vmatpush.msra.mxu0 %v979
    %v981 = vand.u32 %v69, 4294901760
    %v982 = vsub.f32 %v69, %v981
    %983 = vmatpush.msra.mxu0 %v982
    %v984 = vand.u32 %v67, 4294901760
    %v985 = vsub.f32 %v67, %v984
    %986 = vmatpush.msra.mxu0 %v985
    %v987 = vand.u32 %v65, 4294901760
    %v988 = vsub.f32 %v65, %v987
    %989 = vmatpush.msra.mxu0 %v988
    %v990 = vand.u32 %v63, 4294901760
    %v991 = vsub.f32 %v63, %v990
    %992 = vmatpush.msra.mxu0 %v991
    %v993 = vand.u32 %v61, 4294901760
    %v994 = vsub.f32 %v61, %v993
    %995 = vmatpush.msra.mxu0 %v994
    %v996 = vand.u32 %v58, 4294901760
    %v997 = vsub.f32 %v58, %v996
    %998 = vmatmul.f32.gmra.mxu0 %v997
    %v999 = vpop.f32.mrf.mxu0
    %v1000 = vadd.f32 %v946, %v999
    %1001 = vdwg.mxu0
    %v1002 = vand.u32 %v91, 4294901760
    %1003 = vmatpush.msra.mxu0 %v1002
    %v1004 = vand.u32 %v89, 4294901760
    %1005 = vmatpush.msra.mxu0 %v1004
    %v1006 = vand.u32 %v87, 4294901760
    %1007 = vmatpush.msra.mxu0 %v1006
    %v1008 = vand.u32 %v85, 4294901760
    %1009 = vmatpush.msra.mxu0 %v1008
    %v1010 = vand.u32 %v83, 4294901760
    %1011 = vmatpush.msra.mxu0 %v1010
    %v1012 = vand.u32 %v81, 4294901760
    %1013 = vmatpush.msra.mxu0 %v1012
    %v1014 = vand.u32 %v79, 4294901760
    %1015 = vmatpush.msra.mxu0 %v1014
    %v1016 = vand.u32 %v77, 4294901760
    %1017 = vmatpush.msra.mxu0 %v1016
    %v1018 = vand.u32 %v75, 4294901760
    %1019 = vmatpush.msra.mxu0 %v1018
    %v1020 = vand.u32 %v73, 4294901760
    %1021 = vmatpush.msra.mxu0 %v1020
    %v1022 = vand.u32 %v71, 4294901760
    %1023 = vmatpush.msra.mxu0 %v1022
    %v1024 = vand.u32 %v69, 4294901760
    %1025 = vmatpush.msra.mxu0 %v1024
    %v1026 = vand.u32 %v67, 4294901760
    %1027 = vmatpush.msra.mxu0 %v1026
    %v1028 = vand.u32 %v65, 4294901760
    %1029 = vmatpush.msra.mxu0 %v1028
    %v1030 = vand.u32 %v63, 4294901760
    %1031 = vmatpush.msra.mxu0 %v1030
    %v1032 = vand.u32 %v61, 4294901760
    %1033 = vmatpush.msra.mxu0 %v1032
    %v1034 = vand.u32 %v58, 4294901760
    %v1035 = vsub.f32 %v58, %v1034
    %v1036 = vand.u32 %v1035, 4294901760
    %1037 = vmatmul.f32.gmra.mxu0 %v1036
    %v1038 = vpop.f32.mrf.mxu0
    %v1039 = vadd.f32 %v1000, %v1038
    %1040 = vdwg.mxu0
    %v1041 = vand.u32 %v91, 4294901760
    %v1042 = vsub.f32 %v91, %v1041
    %v1043 = vand.u32 %v1042, 4294901760
    %1044 = vmatpush.msra.mxu0 %v1043
    %v1045 = vand.u32 %v89, 4294901760
    %v1046 = vsub.f32 %v89, %v1045
    %v1047 = vand.u32 %v1046, 4294901760
    %1048 = vmatpush.msra.mxu0 %v1047
    %v1049 = vand.u32 %v87, 4294901760
    %v1050 = vsub.f32 %v87, %v1049
    %v1051 = vand.u32 %v1050, 4294901760
    %1052 = vmatpush.msra.mxu0 %v1051
    %v1053 = vand.u32 %v85, 4294901760
    %v1054 = vsub.f32 %v85, %v1053
    %v1055 = vand.u32 %v1054, 4294901760
    %1056 = vmatpush.msra.mxu0 %v1055
    %v1057 = vand.u32 %v83, 4294901760
    %v1058 = vsub.f32 %v83, %v1057
    %v1059 = vand.u32 %v1058, 4294901760
    %1060 = vmatpush.msra.mxu0 %v1059
    %v1061 = vand.u32 %v81, 4294901760
    %v1062 = vsub.f32 %v81, %v1061
    %v1063 = vand.u32 %v1062, 4294901760
    %1064 = vmatpush.msra.mxu0 %v1063
    %v1065 = vand.u32 %v79, 4294901760
    %v1066 = vsub.f32 %v79, %v1065
    %v1067 = vand.u32 %v1066, 4294901760
    %1068 = vmatpush.msra.mxu0 %v1067
    %v1069 = vand.u32 %v77, 4294901760
    %v1070 = vsub.f32 %v77, %v1069
    %v1071 = vand.u32 %v1070, 4294901760
    %1072 = vmatpush.msra.mxu0 %v1071
    %v1073 = vand.u32 %v75, 4294901760
    %v1074 = vsub.f32 %v75, %v1073
    %v1075 = vand.u32 %v1074, 4294901760
    %1076 = vmatpush.msra.mxu0 %v1075
    %v1077 = vand.u32 %v73, 4294901760
    %v1078 = vsub.f32 %v73, %v1077
    %v1079 = vand.u32 %v1078, 4294901760
    %1080 = vmatpush.msra.mxu0 %v1079
    %v1081 = vand.u32 %v71, 4294901760
    %v1082 = vsub.f32 %v71, %v1081
    %v1083 = vand.u32 %v1082, 4294901760
    %1084 = vmatpush.msra.mxu0 %v1083
    %v1085 = vand.u32 %v69, 4294901760
    %v1086 = vsub.f32 %v69, %v1085
    %v1087 = vand.u32 %v1086, 4294901760
    %1088 = vmatpush.msra.mxu0 %v1087
    %v1089 = vand.u32 %v67, 4294901760
    %v1090 = vsub.f32 %v67, %v1089
    %v1091 = vand.u32 %v1090, 4294901760
    %1092 = vmatpush.msra.mxu0 %v1091
    %v1093 = vand.u32 %v65, 4294901760
    %v1094 = vsub.f32 %v65, %v1093
    %v1095 = vand.u32 %v1094, 4294901760
    %1096 = vmatpush.msra.mxu0 %v1095
    %v1097 = vand.u32 %v63, 4294901760
    %v1098 = vsub.f32 %v63, %v1097
    %v1099 = vand.u32 %v1098, 4294901760
    %1100 = vmatpush.msra.mxu0 %v1099
    %v1101 = vand.u32 %v61, 4294901760
    %v1102 = vsub.f32 %v61, %v1101
    %v1103 = vand.u32 %v1102, 4294901760
    %1104 = vmatpush.msra.mxu0 %v1103
    %v1105 = vand.u32 %v58, 4294901760
    %1106 = vmatmul.f32.gmra.mxu0 %v1105
    %v1107 = vpop.f32.mrf.mxu0
    %v1108 = vadd.f32 %v1039, %v1107
    %1109 = vdwg.mxu0
    %v1110 = vand.u32 %v91, 4294901760
    %1111 = vmatpush.msra.mxu0 %v1110
    %v1112 = vand.u32 %v89, 4294901760
    %1113 = vmatpush.msra.mxu0 %v1112
    %v1114 = vand.u32 %v87, 4294901760
    %1115 = vmatpush.msra.mxu0 %v1114
    %v1116 = vand.u32 %v85, 4294901760
    %1117 = vmatpush.msra.mxu0 %v1116
    %v1118 = vand.u32 %v83, 4294901760
    %1119 = vmatpush.msra.mxu0 %v1118
    %v1120 = vand.u32 %v81, 4294901760
    %1121 = vmatpush.msra.mxu0 %v1120
    %v1122 = vand.u32 %v79, 4294901760
    %1123 = vmatpush.msra.mxu0 %v1122
    %v1124 = vand.u32 %v77, 4294901760
    %1125 = vmatpush.msra.mxu0 %v1124
    %v1126 = vand.u32 %v75, 4294901760
    %1127 = vmatpush.msra.mxu0 %v1126
    %v1128 = vand.u32 %v73, 4294901760
    %1129 = vmatpush.msra.mxu0 %v1128
    %v1130 = vand.u32 %v71, 4294901760
    %1131 = vmatpush.msra.mxu0 %v1130
    %v1132 = vand.u32 %v69, 4294901760
    %1133 = vmatpush.msra.mxu0 %v1132
    %v1134 = vand.u32 %v67, 4294901760
    %1135 = vmatpush.msra.mxu0 %v1134
    %v1136 = vand.u32 %v65, 4294901760
    %1137 = vmatpush.msra.mxu0 %v1136
    %v1138 = vand.u32 %v63, 4294901760
    %1139 = vmatpush.msra.mxu0 %v1138
    %v1140 = vand.u32 %v61, 4294901760
    %1141 = vmatpush.msra.mxu0 %v1140
    %v1142 = vand.u32 %v58, 4294901760
    %1143 = vmatmul.f32.gmra.mxu0 %v1142
    %v1144 = vpop.f32.mrf.mxu0
    %v1145 = vadd.f32 %v1108, %v1144
    %1146 = vdwg.mxu0
    %v1147 = vand.u32 %v123, 4294901760
    %1148 = vmatpush.msra.mxu0 %v1147
    %v1149 = vand.u32 %v121, 4294901760
    %1150 = vmatpush.msra.mxu0 %v1149
    %v1151 = vand.u32 %v119, 4294901760
    %1152 = vmatpush.msra.mxu0 %v1151
    %v1153 = vand.u32 %v117, 4294901760
    %1154 = vmatpush.msra.mxu0 %v1153
    %v1155 = vand.u32 %v115, 4294901760
    %1156 = vmatpush.msra.mxu0 %v1155
    %v1157 = vand.u32 %v113, 4294901760
    %1158 = vmatpush.msra.mxu0 %v1157
    %v1159 = vand.u32 %v111, 4294901760
    %1160 = vmatpush.msra.mxu0 %v1159
    %v1161 = vand.u32 %v109, 4294901760
    %1162 = vmatpush.msra.mxu0 %v1161
    %v1163 = vand.u32 %v107, 4294901760
    %1164 = vmatpush.msra.mxu0 %v1163
    %v1165 = vand.u32 %v105, 4294901760
    %1166 = vmatpush.msra.mxu0 %v1165
    %v1167 = vand.u32 %v103, 4294901760
    %1168 = vmatpush.msra.mxu0 %v1167
    %v1169 = vand.u32 %v101, 4294901760
    %1170 = vmatpush.msra.mxu0 %v1169
    %v1171 = vand.u32 %v99, 4294901760
    %1172 = vmatpush.msra.mxu0 %v1171
    %v1173 = vand.u32 %v97, 4294901760
    %1174 = vmatpush.msra.mxu0 %v1173
    %v1175 = vand.u32 %v95, 4294901760
    %1176 = vmatpush.msra.mxu0 %v1175
    %v1177 = vand.u32 %v93, 4294901760
    %1178 = vmatpush.msra.mxu0 %v1177
    %v1179 = vand.u32 %v59, 4294901760
    %v1180 = vsub.f32 %v59, %v1179
    %v1181 = vand.u32 %v1180, 4294901760
    %v1182 = vsub.f32 %v1180, %v1181
    %v1183 = vand.u32 %v1182, 4294901760
    %1184 = vmatmul.f32.gmra.mxu0 %v1183
    %v1185 = vpop.f32.mrf.mxu0
    %v1186 = vadd.f32 %v1145, %v1185
    %1187 = vdwg.mxu0
    %v1188 = vand.u32 %v123, 4294901760
    %v1189 = vsub.f32 %v123, %v1188
    %v1190 = vand.u32 %v1189, 4294901760
    %v1191 = vsub.f32 %v1189, %v1190
    %v1192 = vand.u32 %v1191, 4294901760
    %1193 = vmatpush.msra.mxu0 %v1192
    %v1194 = vand.u32 %v121, 4294901760
    %v1195 = vsub.f32 %v121, %v1194
    %v1196 = vand.u32 %v1195, 4294901760
    %v1197 = vsub.f32 %v1195, %v1196
    %v1198 = vand.u32 %v1197, 4294901760
    %1199 = vmatpush.msra.mxu0 %v1198
    %v1200 = vand.u32 %v119, 4294901760
    %v1201 = vsub.f32 %v119, %v1200
    %v1202 = vand.u32 %v1201, 4294901760
    %v1203 = vsub.f32 %v1201, %v1202
    %v1204 = vand.u32 %v1203, 4294901760
    %1205 = vmatpush.msra.mxu0 %v1204
    %v1206 = vand.u32 %v117, 4294901760
    %v1207 = vsub.f32 %v117, %v1206
    %v1208 = vand.u32 %v1207, 4294901760
    %v1209 = vsub.f32 %v1207, %v1208
    %v1210 = vand.u32 %v1209, 4294901760
    %1211 = vmatpush.msra.mxu0 %v1210
    %v1212 = vand.u32 %v115, 4294901760
    %v1213 = vsub.f32 %v115, %v1212
    %v1214 = vand.u32 %v1213, 4294901760
    %v1215 = vsub.f32 %v1213, %v1214
    %v1216 = vand.u32 %v1215, 4294901760
    %1217 = vmatpush.msra.mxu0 %v1216
    %v1218 = vand.u32 %v113, 4294901760
    %v1219 = vsub.f32 %v113, %v1218
    %v1220 = vand.u32 %v1219, 4294901760
    %v1221 = vsub.f32 %v1219, %v1220
    %v1222 = vand.u32 %v1221, 4294901760
    %1223 = vmatpush.msra.mxu0 %v1222
    %v1224 = vand.u32 %v111, 4294901760
    %v1225 = vsub.f32 %v111, %v1224
    %v1226 = vand.u32 %v1225, 4294901760
    %v1227 = vsub.f32 %v1225, %v1226
    %v1228 = vand.u32 %v1227, 4294901760
    %1229 = vmatpush.msra.mxu0 %v1228
    %v1230 = vand.u32 %v109, 4294901760
    %v1231 = vsub.f32 %v109, %v1230
    %v1232 = vand.u32 %v1231, 4294901760
    %v1233 = vsub.f32 %v1231, %v1232
    %v1234 = vand.u32 %v1233, 4294901760
    %1235 = vmatpush.msra.mxu0 %v1234
    %v1236 = vand.u32 %v107, 4294901760
    %v1237 = vsub.f32 %v107, %v1236
    %v1238 = vand.u32 %v1237, 4294901760
    %v1239 = vsub.f32 %v1237, %v1238
    %v1240 = vand.u32 %v1239, 4294901760
    %1241 = vmatpush.msra.mxu0 %v1240
    %v1242 = vand.u32 %v105, 4294901760
    %v1243 = vsub.f32 %v105, %v1242
    %v1244 = vand.u32 %v1243, 4294901760
    %v1245 = vsub.f32 %v1243, %v1244
    %v1246 = vand.u32 %v1245, 4294901760
    %1247 = vmatpush.msra.mxu0 %v1246
    %v1248 = vand.u32 %v103, 4294901760
    %v1249 = vsub.f32 %v103, %v1248
    %v1250 = vand.u32 %v1249, 4294901760
    %v1251 = vsub.f32 %v1249, %v1250
    %v1252 = vand.u32 %v1251, 4294901760
    %1253 = vmatpush.msra.mxu0 %v1252
    %v1254 = vand.u32 %v101, 4294901760
    %v1255 = vsub.f32 %v101, %v1254
    %v1256 = vand.u32 %v1255, 4294901760
    %v1257 = vsub.f32 %v1255, %v1256
    %v1258 = vand.u32 %v1257, 4294901760
    %1259 = vmatpush.msra.mxu0 %v1258
    %v1260 = vand.u32 %v99, 4294901760
    %v1261 = vsub.f32 %v99, %v1260
    %v1262 = vand.u32 %v1261, 4294901760
    %v1263 = vsub.f32 %v1261, %v1262
    %v1264 = vand.u32 %v1263, 4294901760
    %1265 = vmatpush.msra.mxu0 %v1264
    %v1266 = vand.u32 %v97, 4294901760
    %v1267 = vsub.f32 %v97, %v1266
    %v1268 = vand.u32 %v1267, 4294901760
    %v1269 = vsub.f32 %v1267, %v1268
    %v1270 = vand.u32 %v1269, 4294901760
    %1271 = vmatpush.msra.mxu0 %v1270
    %v1272 = vand.u32 %v95, 4294901760
    %v1273 = vsub.f32 %v95, %v1272
    %v1274 = vand.u32 %v1273, 4294901760
    %v1275 = vsub.f32 %v1273, %v1274
    %v1276 = vand.u32 %v1275, 4294901760
    %1277 = vmatpush.msra.mxu0 %v1276
    %v1278 = vand.u32 %v93, 4294901760
    %v1279 = vsub.f32 %v93, %v1278
    %v1280 = vand.u32 %v1279, 4294901760
    %v1281 = vsub.f32 %v1279, %v1280
    %v1282 = vand.u32 %v1281, 4294901760
    %1283 = vmatpush.msra.mxu0 %v1282
    %v1284 = vand.u32 %v59, 4294901760
    %1285 = vmatmul.f32.gmra.mxu0 %v1284
    %v1286 = vpop.f32.mrf.mxu0
    %v1287 = vadd.f32 %v1186, %v1286
    %1288 = vdwg.mxu0
    %v1289 = vand.u32 %v123, 4294901760
    %v1290 = vsub.f32 %v123, %v1289
    %1291 = vmatpush.msra.mxu0 %v1290
    %v1292 = vand.u32 %v121, 4294901760
    %v1293 = vsub.f32 %v121, %v1292
    %1294 = vmatpush.msra.mxu0 %v1293
    %v1295 = vand.u32 %v119, 4294901760
    %v1296 = vsub.f32 %v119, %v1295
    %1297 = vmatpush.msra.mxu0 %v1296
    %v1298 = vand.u32 %v117, 4294901760
    %v1299 = vsub.f32 %v117, %v1298
    %1300 = vmatpush.msra.mxu0 %v1299
    %v1301 = vand.u32 %v115, 4294901760
    %v1302 = vsub.f32 %v115, %v1301
    %1303 = vmatpush.msra.mxu0 %v1302
    %v1304 = vand.u32 %v113, 4294901760
    %v1305 = vsub.f32 %v113, %v1304
    %1306 = vmatpush.msra.mxu0 %v1305
    %v1307 = vand.u32 %v111, 4294901760
    %v1308 = vsub.f32 %v111, %v1307
    %1309 = vmatpush.msra.mxu0 %v1308
    %v1310 = vand.u32 %v109, 4294901760
    %v1311 = vsub.f32 %v109, %v1310
    %1312 = vmatpush.msra.mxu0 %v1311
    %v1313 = vand.u32 %v107, 4294901760
    %v1314 = vsub.f32 %v107, %v1313
    %1315 = vmatpush.msra.mxu0 %v1314
    %v1316 = vand.u32 %v105, 4294901760
    %v1317 = vsub.f32 %v105, %v1316
    %1318 = vmatpush.msra.mxu0 %v1317
    %v1319 = vand.u32 %v103, 4294901760
    %v1320 = vsub.f32 %v103, %v1319
    %1321 = vmatpush.msra.mxu0 %v1320
    %v1322 = vand.u32 %v101, 4294901760
    %v1323 = vsub.f32 %v101, %v1322
    %1324 = vmatpush.msra.mxu0 %v1323
    %v1325 = vand.u32 %v99, 4294901760
    %v1326 = vsub.f32 %v99, %v1325
    %1327 = vmatpush.msra.mxu0 %v1326
    %v1328 = vand.u32 %v97, 4294901760
    %v1329 = vsub.f32 %v97, %v1328
    %1330 = vmatpush.msra.mxu0 %v1329
    %v1331 = vand.u32 %v95, 4294901760
    %v1332 = vsub.f32 %v95, %v1331
    %1333 = vmatpush.msra.mxu0 %v1332
    %v1334 = vand.u32 %v93, 4294901760
    %v1335 = vsub.f32 %v93, %v1334
    %1336 = vmatpush.msra.mxu0 %v1335
    %v1337 = vand.u32 %v59, 4294901760
    %v1338 = vsub.f32 %v59, %v1337
    %1339 = vmatmul.f32.gmra.mxu0 %v1338
    %v1340 = vpop.f32.mrf.mxu0
    %v1341 = vadd.f32 %v1287, %v1340
    %1342 = vdwg.mxu0
    %v1343 = vand.u32 %v123, 4294901760
    %1344 = vmatpush.msra.mxu0 %v1343
    %v1345 = vand.u32 %v121, 4294901760
    %1346 = vmatpush.msra.mxu0 %v1345
    %v1347 = vand.u32 %v119, 4294901760
    %1348 = vmatpush.msra.mxu0 %v1347
    %v1349 = vand.u32 %v117, 4294901760
    %1350 = vmatpush.msra.mxu0 %v1349
    %v1351 = vand.u32 %v115, 4294901760
    %1352 = vmatpush.msra.mxu0 %v1351
    %v1353 = vand.u32 %v113, 4294901760
    %1354 = vmatpush.msra.mxu0 %v1353
    %v1355 = vand.u32 %v111, 4294901760
    %1356 = vmatpush.msra.mxu0 %v1355
    %v1357 = vand.u32 %v109, 4294901760
    %1358 = vmatpush.msra.mxu0 %v1357
    %v1359 = vand.u32 %v107, 4294901760
    %1360 = vmatpush.msra.mxu0 %v1359
    %v1361 = vand.u32 %v105, 4294901760
    %1362 = vmatpush.msra.mxu0 %v1361
    %v1363 = vand.u32 %v103, 4294901760
    %1364 = vmatpush.msra.mxu0 %v1363
    %v1365 = vand.u32 %v101, 4294901760
    %1366 = vmatpush.msra.mxu0 %v1365
    %v1367 = vand.u32 %v99, 4294901760
    %1368 = vmatpush.msra.mxu0 %v1367
    %v1369 = vand.u32 %v97, 4294901760
    %1370 = vmatpush.msra.mxu0 %v1369
    %v1371 = vand.u32 %v95, 4294901760
    %1372 = vmatpush.msra.mxu0 %v1371
    %v1373 = vand.u32 %v93, 4294901760
    %1374 = vmatpush.msra.mxu0 %v1373
    %v1375 = vand.u32 %v59, 4294901760
    %v1376 = vsub.f32 %v59, %v1375
    %v1377 = vand.u32 %v1376, 4294901760
    %1378 = vmatmul.f32.gmra.mxu0 %v1377
    %v1379 = vpop.f32.mrf.mxu0
    %v1380 = vadd.f32 %v1341, %v1379
    %1381 = vdwg.mxu0
    %v1382 = vand.u32 %v123, 4294901760
    %v1383 = vsub.f32 %v123, %v1382
    %v1384 = vand.u32 %v1383, 4294901760
    %1385 = vmatpush.msra.mxu0 %v1384
    %v1386 = vand.u32 %v121, 4294901760
    %v1387 = vsub.f32 %v121, %v1386
    %v1388 = vand.u32 %v1387, 4294901760
    %1389 = vmatpush.msra.mxu0 %v1388
    %v1390 = vand.u32 %v119, 4294901760
    %v1391 = vsub.f32 %v119, %v1390
    %v1392 = vand.u32 %v1391, 4294901760
    %1393 = vmatpush.msra.mxu0 %v1392
    %v1394 = vand.u32 %v117, 4294901760
    %v1395 = vsub.f32 %v117, %v1394
    %v1396 = vand.u32 %v1395, 4294901760
    %1397 = vmatpush.msra.mxu0 %v1396
    %v1398 = vand.u32 %v115, 4294901760
    %v1399 = vsub.f32 %v115, %v1398
    %v1400 = vand.u32 %v1399, 4294901760
    %1401 = vmatpush.msra.mxu0 %v1400
    %v1402 = vand.u32 %v113, 4294901760
    %v1403 = vsub.f32 %v113, %v1402
    %v1404 = vand.u32 %v1403, 4294901760
    %1405 = vmatpush.msra.mxu0 %v1404
    %v1406 = vand.u32 %v111, 4294901760
    %v1407 = vsub.f32 %v111, %v1406
    %v1408 = vand.u32 %v1407, 4294901760
    %1409 = vmatpush.msra.mxu0 %v1408
    %v1410 = vand.u32 %v109, 4294901760
    %v1411 = vsub.f32 %v109, %v1410
    %v1412 = vand.u32 %v1411, 4294901760
    %1413 = vmatpush.msra.mxu0 %v1412
    %v1414 = vand.u32 %v107, 4294901760
    %v1415 = vsub.f32 %v107, %v1414
    %v1416 = vand.u32 %v1415, 4294901760
    %1417 = vmatpush.msra.mxu0 %v1416
    %v1418 = vand.u32 %v105, 4294901760
    %v1419 = vsub.f32 %v105, %v1418
    %v1420 = vand.u32 %v1419, 4294901760
    %1421 = vmatpush.msra.mxu0 %v1420
    %v1422 = vand.u32 %v103, 4294901760
    %v1423 = vsub.f32 %v103, %v1422
    %v1424 = vand.u32 %v1423, 4294901760
    %1425 = vmatpush.msra.mxu0 %v1424
    %v1426 = vand.u32 %v101, 4294901760
    %v1427 = vsub.f32 %v101, %v1426
    %v1428 = vand.u32 %v1427, 4294901760
    %1429 = vmatpush.msra.mxu0 %v1428
    %v1430 = vand.u32 %v99, 4294901760
    %v1431 = vsub.f32 %v99, %v1430
    %v1432 = vand.u32 %v1431, 4294901760
    %1433 = vmatpush.msra.mxu0 %v1432
    %v1434 = vand.u32 %v97, 4294901760
    %v1435 = vsub.f32 %v97, %v1434
    %v1436 = vand.u32 %v1435, 4294901760
    %1437 = vmatpush.msra.mxu0 %v1436
    %v1438 = vand.u32 %v95, 4294901760
    %v1439 = vsub.f32 %v95, %v1438
    %v1440 = vand.u32 %v1439, 4294901760
    %1441 = vmatpush.msra.mxu0 %v1440
    %v1442 = vand.u32 %v93, 4294901760
    %v1443 = vsub.f32 %v93, %v1442
    %v1444 = vand.u32 %v1443, 4294901760
    %1445 = vmatpush.msra.mxu0 %v1444
    %v1446 = vand.u32 %v59, 4294901760
    %1447 = vmatmul.f32.gmra.mxu0 %v1446
    %v1448 = vpop.f32.mrf.mxu0
    %v1449 = vadd.f32 %v1380, %v1448
    %1450 = vdwg.mxu0
    %v1451 = vand.u32 %v123, 4294901760
    %1452 = vmatpush.msra.mxu0 %v1451
    %v1453 = vand.u32 %v121, 4294901760
    %1454 = vmatpush.msra.mxu0 %v1453
    %v1455 = vand.u32 %v119, 4294901760
    %1456 = vmatpush.msra.mxu0 %v1455
    %v1457 = vand.u32 %v117, 4294901760
    %1458 = vmatpush.msra.mxu0 %v1457
    %v1459 = vand.u32 %v115, 4294901760
    %1460 = vmatpush.msra.mxu0 %v1459
    %v1461 = vand.u32 %v113, 4294901760
    %1462 = vmatpush.msra.mxu0 %v1461
    %v1463 = vand.u32 %v111, 4294901760
    %1464 = vmatpush.msra.mxu0 %v1463
    %v1465 = vand.u32 %v109, 4294901760
    %1466 = vmatpush.msra.mxu0 %v1465
    %v1467 = vand.u32 %v107, 4294901760
    %1468 = vmatpush.msra.mxu0 %v1467
    %v1469 = vand.u32 %v105, 4294901760
    %1470 = vmatpush.msra.mxu0 %v1469
    %v1471 = vand.u32 %v103, 4294901760
    %1472 = vmatpush.msra.mxu0 %v1471
    %v1473 = vand.u32 %v101, 4294901760
    %1474 = vmatpush.msra.mxu0 %v1473
    %v1475 = vand.u32 %v99, 4294901760
    %1476 = vmatpush.msra.mxu0 %v1475
    %v1477 = vand.u32 %v97, 4294901760
    %1478 = vmatpush.msra.mxu0 %v1477
    %v1479 = vand.u32 %v95, 4294901760
    %1480 = vmatpush.msra.mxu0 %v1479
    %v1481 = vand.u32 %v93, 4294901760
    %1482 = vmatpush.msra.mxu0 %v1481
    %v1483 = vand.u32 %v59, 4294901760
    %1484 = vmatmul.f32.gmra.mxu0 %v1483
    %v1485 = vpop.f32.mrf.mxu0
    %v1486 = vadd.f32 %v1449, %v1485
    %1487 = vdwg.mxu0
    %s1488 = sld [smem:[#allocation2]]
    %s1489 = sld [smem:[#allocation2 + $0x1]]
    %s1490 = sld [smem:[#allocation2 + $0x2]]
    %s1491 = sld [smem:[#allocation2 + $0x3]]
    %s1492 = sld [smem:[#allocation2 + $0x4]]
    %s1493 = sld [smem:[#allocation2 + $0x5]]
    %s1494 = sld [smem:[#allocation2 + $0x6]]
    %s1495 = sld [smem:[#allocation2 + $0x7]]
    %s1496 = sld [smem:[#allocation2 + $0x8]]
    %v1497 = vstv %s1488
    %v1498 = vmul.f32 %v1497, %v804
    %v1499 = vstv %s1489
    %v1500 = vmul.f32 %v1499, %v1486
    %v1501 = vadd.f32 %v1498, %v1500
    %v1502 = vstv %s1492
    %v1503 = vadd.f32 %v1501, %v1502
    %v1504 = vmul.f32 %v1503, 0.5
    %v1505 = vtanh.pop %v1504
    %v1506 = vmul.f32 %v1505, 0.5
    %v1507 = vadd.f32 %v1506, 0.5
    %v1508 = vstv %s1490
    %v1509 = vmul.f32 %v1508, %v804
    %v1510 = vstv %s1491
    %v1511 = vmul.f32 %v1510, %v1486
    %v1512 = vadd.f32 %v1509, %v1511
    %v1513 = vstv %s1493
    %v1514 = vadd.f32 %v1512, %v1513
    %v1515 = vmul.f32 %v1514, 0.5
    %v1516 = vtanh.pop %v1515
    %v1517 = vmul.f32 %v1516, 0.5
    %v1518 = vadd.f32 %v1517, 0.5
    %v1519 = vstv %s1494
    %v1520 = vmul.f32 %v1519, %v1507
    %v1521 = vstv %s1495
    %v1522 = vmul.f32 %v1521, %v1518
    %v1523 = vadd.f32 %v1520, %v1522
    %v1524 = vstv %s1496
    %v1525 = vadd.f32 %v1523, %v1524
    %v1526 = vmul.f32 %v1525, 0.5
    %v1527 = vtanh.pop %v1526
    %v1528 = vmul.f32 %v1527, 0.5
    %v1529 = vadd.f32 %v1528, 0.5
    %1530 = vst [vmem:[#allocation9] sm:$0xff] %v1529
    // Predicated region
    $region26: #{tpu_custom_call.1} parent=1 // pred_check
      _
    $region27: #{tpu_custom_call.1} parent=1 // pred_check_branch
      %1532 = sbr.rel (0) target = $region29
    $region28: #{tpu_custom_call.1} parent=1 // pred_region
      %1534 = vsyncadd [#allocation4], 0
      %s1536 = sshll.u32 [#allocation9], 4
      %s1537 = int_to_ptr.vmem [resolvable:$true] %s1536
      %s1538 = sshll.u32 %s3, 4
      %s1539 = int_to_ptr.hbm [resolvable:$true] %s1538
      %1541 = dma.vmem_to_hbm [thread:$0]  %s1537, 128, %s1539, [#allocation4]
    $region29: #{tpu_custom_call.1} parent=1 // pred_fallthru
      _
    // Predicated region
    $region30: #{tpu_custom_call.1} parent=1 // pred_check
      _
    $region31: #{tpu_custom_call.1} parent=1 // pred_check_branch
      %1543 = sbr.rel (0) target = $region33
    $region32: #{tpu_custom_call.1} parent=1 // pred_region
      %1545 = dma.done [#allocation4], 128
    $region33: #{tpu_custom_call.1} parent=1 // pred_fallthru
      _
    %1546 = vsyncpa [#allocation3], 1
    %1547 = vsyncpa [#allocation8], 1
    %1548 = vsyncpa [#allocation4], 1
    %1549 = vsyncpa [#allocation5], 1

</llo_original>
